<compile_context>
chip_gen: v6e
topology: v6e:2x2x1
jax: 0.10.0
libtpu: 0.0.40
codegen_flags: <defaults>
</compile_context>

<pallas_src>
import functools

import jax
import jax.numpy as jnp
import numpy as np
from jax import lax
from jax.experimental import pallas as pl
from jax.experimental.pallas import tpu as pltpu


def _loss_kernel(ws_ref, b_ref,                    # scalar prefetch (SMEM): (F,), (F,)
                 r_ref, x_ref, mu_ref, lv_ref,     # inputs
                 out_ref,                          # (1, 1) SMEM output
                 sq_acc, rmin_acc, rmax_acc, xmin_acc, xmax_acc, lp_acc,  # (1,128) VMEM
                 sc_ref,                           # (4,) SMEM scalars
                 *, n_feat, m_total, pad_total, block_rows, loss_weight, needs_mask):
    phase = pl.program_id(0)
    blk = pl.program_id(1)
    nblk = pl.num_programs(1)

    inf = jnp.float32(jnp.inf)
    zero = jnp.float32(0.0)

    # ---- accumulator init (first grid step only) ----------------------------
    @pl.when((phase == 0) & (blk == 0))
    def _init():
        sq_acc[...] = jnp.zeros_like(sq_acc)
        lp_acc[...] = jnp.zeros_like(lp_acc)
        rmin_acc[...] = jnp.full_like(rmin_acc, inf)
        rmax_acc[...] = jnp.full_like(rmax_acc, -inf)
        xmin_acc[...] = jnp.full_like(xmin_acc, inf)
        xmax_acc[...] = jnp.full_like(xmax_acc, -inf)

    r = r_ref[...].astype(jnp.float32)
    x = x_ref[...].astype(jnp.float32)

    # ---- phase 0: partial sum((r-x)^2) + per-lane running min/max -----------
    @pl.when(phase == 0)
    def _stats():
        diff = r - x        # padding is zero in BOTH arrays -> diff is exactly 0
        sq_acc[...] += jnp.sum(diff * diff, axis=0, keepdims=True)

        def upd_minmax(r_lo, r_hi, x_lo, x_hi):
            rmin_acc[...] = jnp.minimum(rmin_acc[...],
                                        jnp.min(r_lo, axis=0, keepdims=True))
            rmax_acc[...] = jnp.maximum(rmax_acc[...],
                                        jnp.max(r_hi, axis=0, keepdims=True))
            xmin_acc[...] = jnp.minimum(xmin_acc[...],
                                        jnp.min(x_lo, axis=0, keepdims=True))
            xmax_acc[...] = jnp.maximum(xmax_acc[...],
                                        jnp.max(x_hi, axis=0, keepdims=True))

        if needs_mask:
            is_tail = blk == nblk - 1

            @pl.when(is_tail)            # masking work only on the tail block
            def _tail():
                row = lax.broadcasted_iota(jnp.int32, r.shape, 0)
                lane = lax.broadcasted_iota(jnp.int32, r.shape, 1)
                flat = (blk * block_rows + row) * 128 + lane
                mask = flat < m_total
                upd_minmax(jnp.where(mask, r, inf), jnp.where(mask, r, -inf),
                           jnp.where(mask, x, inf), jnp.where(mask, x, -inf))

            @pl.when(blk != nblk - 1)
            def _body():
                upd_minmax(r, r, x, x)
        else:
            upd_minmax(r, r, x, x)

    # ---- phase 1, first block: collapse min/max accumulators to scalars -----
    @pl.when((phase == 1) & (blk == 0))
    def _scalars():
        rmin = jnp.min(rmin_acc[...])
        rmax = jnp.max(rmax_acc[...])
        xmin = jnp.min(xmin_acc[...])
        xmax = jnp.max(xmax_acc[...])
        sc_ref[0] = rmin
        sc_ref[1] = xmin
        sc_ref[2] = 1.0 / (rmax - rmin + 1e-6)
        sc_ref[3] = 1.0 / (xmax - xmin + 1e-6)

    # ---- phase 1: surrogate-LPIPS feature loss on the RAW tiles --------------
    # normalize_tensor_01 is folded into per-feature affine constants:
    #   fr = relu(rn*ws[f] + b[f]) == relu(r*a_rf + c_rf)
    # with a_rf = ws[f]*inv_r, c_rf = b[f] - rmin*a_rf (scalar-only setup).
    @pl.when(phase == 1)
    def _lpips():
        rmin = sc_ref[0]
        xmin = sc_ref[1]
        inv_r = sc_ref[2]
        inv_x = sc_ref[3]
        acc = None
        for f in range(n_feat):        # F is small; fully unrolled VPU passes
            a_rf = ws_ref[f] * inv_r
            c_rf = b_ref[f] - rmin * a_rf
            a_xf = ws_ref[f] * inv_x
            c_xf = b_ref[f] - xmin * a_xf
            fr = jnp.maximum(r * a_rf + c_rf, zero)
            fx = jnp.maximum(x * a_xf + c_xf, zero)
            d = fr - fx
            acc = d * d if acc is None else acc + d * d
        lp_acc[...] += jnp.sum(acc, axis=0, keepdims=True)

    # ---- finalize: KL + weighted combine -------------------------------------
    @pl.when((phase == 1) & (blk == nblk - 1))
    def _final():
        mse = jnp.sum(sq_acc[...]) / m_total
        lp_sum = jnp.sum(lp_acc[...])
        if needs_mask:
            # Closed-form removal of the padded lanes' (constant) contribution:
            # on padding r = x = 0, so fr = relu(c_rf), fx = relu(c_xf).
            rmin = sc_ref[0]
            xmin = sc_ref[1]
            inv_r = sc_ref[2]
            inv_x = sc_ref[3]
            corr = zero
            for f in range(n_feat):
                c_rf = b_ref[f] - rmin * (ws_ref[f] * inv_r)
                c_xf = b_ref[f] - xmin * (ws_ref[f] * inv_x)
                dpad = jnp.maximum(c_rf, zero) - jnp.maximum(c_xf, zero)
                corr = corr + dpad * dpad
            lp_sum = lp_sum - pad_total * corr
        lpips_loss = lp_sum / (m_total * n_feat)
        mu = mu_ref[...].astype(jnp.float32)
        lv = lv_ref[...].astype(jnp.float32)
        kl = -0.5 * jnp.sum(1.0 + lv - mu * mu - jnp.exp(lv))
        out_ref[0, 0] = kl + (lpips_loss * 0.3 + mse * 0.5) * loss_weight


def total_evapotranspiration_vae_loss(reconstructed_x, x, mu, logvar,
                                      lpips_w, lpips_b, *,
                                      data_length, batch_size,
                                      max_block_rows=2048):
    B, C, H, W = reconstructed_x.shape
    # rn3 @ w == rn * w.sum(0) is exact only because repeat(1,3,1,1) duplicates
    # a single channel three times.
    assert C == 1, "surrogate-LPIPS channel folding requires a single input channel"
    M = B * C * H * W
    F = lpips_w.shape[1]

    # Lane-dense (rows, 128) layout, sublane-aligned, tiled by `tm` rows.
    rows = -(-M // 128)
    rows = ((rows + 7) // 8) * 8
    tm = min(max_block_rows, rows)
    tm = ((tm + 7) // 8) * 8
    nblk = -(-rows // tm)
    padded_rows = nblk * tm
    m_pad = padded_rows * 128
    pad = m_pad - M

    # Keep native dtype (cast in-kernel) so bf16 inputs halve the DMA bytes.
    r_flat = reconstructed_x.reshape(M)
    x_flat = x.reshape(M)
    if pad:
        r_flat = jnp.pad(r_flat, (0, pad))
        x_flat = jnp.pad(x_flat, (0, pad))
    r2 = r_flat.reshape(padded_rows, 128)
    x2 = x_flat.reshape(padded_rows, 128)

    # Fold the 3 identical channels into one weight vector: w.sum(axis=0).
    ws = jnp.sum(lpips_w, axis=0).astype(jnp.float32).reshape(F)
    bs = lpips_b.astype(jnp.float32).reshape(F)

    kernel = functools.partial(
        _loss_kernel,
        n_feat=F,
        m_total=M,
        pad_total=pad,
        block_rows=tm,
        loss_weight=float(data_length) / float(batch_size),
        needs_mask=pad > 0,
    )

    # grid = (phase, block): phase MUST be the outer (slowest) axis -- phase 1
    # consumes the global min/max produced by the whole phase-0 sweep.
    grid_spec = pltpu.PrefetchScalarGridSpec(
        num_scalar_prefetch=2,
        grid=(2, nblk),
        in_specs=[
            pl.BlockSpec((tm, 128), lambda p, i, ws, bs: (i, 0)),
            pl.BlockSpec((tm, 128), lambda p, i, ws, bs: (i, 0)),
            pl.BlockSpec(mu.shape, lambda p, i, ws, bs: (0, 0)),
            pl.BlockSpec(logvar.shape, lambda p, i, ws, bs: (0, 0)),
        ],
        out_specs=pl.BlockSpec((1, 1), lambda p, i, ws, bs: (0, 0),
                               memory_space=pltpu.MemorySpace.SMEM),
        scratch_shapes=[pltpu.VMEM((1, 128), jnp.float32)] * 6
                      + [pltpu.SMEM((4,), jnp.float32)],
    )

    out = pl.pallas_call(
        kernel,
        out_shape=jax.ShapeDtypeStruct((1, 1), jnp.float32),
        grid_spec=grid_spec,
        # Both axes are sequential reductions into persistent scratch.
        compiler_params=pltpu.CompilerParams(
            dimension_semantics=("arbitrary", "arbitrary"),
            vmem_limit_bytes=32 * 1024 * 1024),
    )(ws, bs, r2, x2, mu, logvar)
    return out[0, 0]


def _reference(recon, x, mu, logvar, w, b, data_length, batch_size):
    """Pure-JAX reference mirroring the PyTorch forward (with surrogate LPIPS)."""
    lw = data_length / batch_size

    def norm01(t):
        return (t - jnp.min(t)) / (jnp.max(t) - jnp.min(t) + 1e-6)

    mse = jnp.mean((recon - x) ** 2)
    rn = jnp.tile(norm01(recon), (1, 3, 1, 1))           # NCHW repeat(1,3,1,1)
    xn = jnp.tile(norm01(x), (1, 3, 1, 1))
    rf = jnp.transpose(rn, (0, 2, 3, 1)).reshape(-1, 3)  # per-pixel 3-vectors
    xf = jnp.transpose(xn, (0, 2, 3, 1)).reshape(-1, 3)
    fr = jnp.maximum(rf @ w + b, 0.0)
    fx = jnp.maximum(xf @ w + b, 0.0)
    lpips_loss = jnp.mean((fr - fx) ** 2)
    kl = -0.5 * jnp.sum(1.0 + logvar - mu * mu - jnp.exp(logvar))
    return kl + (lpips_loss * 0.3 + mse * 0.5) * lw


if __name__ == "__main__":
    key = jax.random.PRNGKey(0)
    k1, k2, k3, k4, k5, k6 = jax.random.split(key, 6)

    B, C, H, W = 2, 1, 16, 16
    latent = 32
    data_length = 100              # -> loss_weight = 50.0
    batch_size = B
    F = 8                          # surrogate-LPIPS feature width

    reconstructed_x = jax.random.normal(k1, (B, C, H, W), jnp.float32)
    x = jax.random.normal(k2, (B, C, H, W), jnp.float32)
    mu = 0.5 * jax.random.normal(k3, (B, latent), jnp.float32)
    logvar = 0.1 * jax.random.normal(k4, (B, latent), jnp.float32)

    # Deterministic synthetic parameters for the LPIPS surrogate.
    lpips_w = 0.1 * jax.random.normal(k5, (3, F), jnp.float32)
    lpips_b = 0.01 * jax.random.normal(k6, (1, F), jnp.float32)

    out = total_evapotranspiration_vae_loss(
        reconstructed_x, x, mu, logvar, lpips_w, lpips_b,
        data_length=data_length, batch_size=batch_size)
    out = jax.block_until_ready(out)

    ref = _reference(reconstructed_x, x, mu, logvar, lpips_w, lpips_b,
                     data_length, batch_size)
    np.testing.assert_allclose(np.asarray(out), np.asarray(ref),
                               rtol=1e-5, atol=1e-5)
    print("KERNEL_OK")
</pallas_src>

<mosaic_0001>
module attributes {stable_mosaic.version = 11 : i64} {
  func.func @_loss_kernel(%arg0: i32, %arg1: i32, %arg2: memref<8xf32, #tpu.memory_space<smem>>, %arg3: memref<8xf32, #tpu.memory_space<smem>>, %arg4: memref<8x128xf32, #tpu.memory_space<vmem>>, %arg5: memref<8x128xf32, #tpu.memory_space<vmem>>, %arg6: memref<2x32xf32, #tpu.memory_space<vmem>>, %arg7: memref<2x32xf32, #tpu.memory_space<vmem>>, %arg8: memref<1x1xf32, #tpu.memory_space<smem>>, %arg9: memref<1x128xf32, #tpu.memory_space<vmem>>, %arg10: memref<1x128xf32, #tpu.memory_space<vmem>>, %arg11: memref<1x128xf32, #tpu.memory_space<vmem>>, %arg12: memref<1x128xf32, #tpu.memory_space<vmem>>, %arg13: memref<1x128xf32, #tpu.memory_space<vmem>>, %arg14: memref<1x128xf32, #tpu.memory_space<vmem>>, %arg15: memref<4xf32, #tpu.memory_space<smem>>) attributes {dimension_semantics = [#tpu.dimension_semantics<arbitrary>, #tpu.dimension_semantics<arbitrary>], iteration_bounds = array<i64: 2, 1>, scalar_prefetch = 2 : i64, scratch_operands = 7 : i64, tpu.core_type = #tpu.core_type<tc>, window_params = [{transform_indices = @transform_0, window_bounds = array<i64: 8, 128>}, {transform_indices = @transform_1, window_bounds = array<i64: 8, 128>}, {pipeline_mode = #tpu.pipeline_mode<synchronous>, transform_indices = @transform_2, window_bounds = array<i64: 2, 32>}, {pipeline_mode = #tpu.pipeline_mode<synchronous>, transform_indices = @transform_3, window_bounds = array<i64: 2, 32>}, {transform_indices = @transform_4, window_bounds = array<i64: 1, 1>}]} {
    %c0_i32 = arith.constant 0 : i32
    %0 = arith.cmpi eq, %arg0, %c0_i32 : i32
    %c0_i32_0 = arith.constant 0 : i32
    %1 = arith.cmpi eq, %arg1, %c0_i32_0 : i32
    %2 = arith.andi %0, %1 : i1
    %3 = arith.extui %2 : i1 to i32
    %cst = arith.constant 0x7F800000 : f32
    %c0_i32_1 = arith.constant 0 : i32
    %4 = arith.cmpi ne, %3, %c0_i32_1 : i32
    scf.if %4 {
      %cst_17 = arith.constant 0.000000e+00 : f32
      %23 = vector.broadcast %cst_17 : f32 to vector<1x128xf32>
      %c0_18 = arith.constant 0 : index
      %c0_19 = arith.constant 0 : index
      %24 = vector.load %arg9[%c0_18, %c0_19] : memref<1x128xf32, #tpu.memory_space<vmem>>, vector<1x128xf32>
      tpu.vector_store %arg9[%c0_18, %c0_19], %23 {strides = array<i32>} : memref<1x128xf32, #tpu.memory_space<vmem>>, vector<1x128xf32>,
      %cst_20 = arith.constant 0.000000e+00 : f32
      %25 = vector.broadcast %cst_20 : f32 to vector<1x128xf32>
      %c0_21 = arith.constant 0 : index
      %c0_22 = arith.constant 0 : index
      %26 = vector.load %arg14[%c0_21, %c0_22] : memref<1x128xf32, #tpu.memory_space<vmem>>, vector<1x128xf32>
      tpu.vector_store %arg14[%c0_21, %c0_22], %25 {strides = array<i32>} : memref<1x128xf32, #tpu.memory_space<vmem>>, vector<1x128xf32>,
      %27 = vector.broadcast %cst : f32 to vector<1x128xf32>
      %c0_23 = arith.constant 0 : index
      %c0_24 = arith.constant 0 : index
      %28 = vector.load %arg10[%c0_23, %c0_24] : memref<1x128xf32, #tpu.memory_space<vmem>>, vector<1x128xf32>
      tpu.vector_store %arg10[%c0_23, %c0_24], %27 {strides = array<i32>} : memref<1x128xf32, #tpu.memory_space<vmem>>, vector<1x128xf32>,
      %cst_25 = arith.constant 0.000000e+00 : f32
      %29 = arith.subf %cst_25, %cst : f32
      %30 = vector.broadcast %29 : f32 to vector<1x128xf32>
      %c0_26 = arith.constant 0 : index
      %c0_27 = arith.constant 0 : index
      %31 = vector.load %arg11[%c0_26, %c0_27] : memref<1x128xf32, #tpu.memory_space<vmem>>, vector<1x128xf32>
      tpu.vector_store %arg11[%c0_26, %c0_27], %30 {strides = array<i32>} : memref<1x128xf32, #tpu.memory_space<vmem>>, vector<1x128xf32>,
      %32 = vector.broadcast %cst : f32 to vector<1x128xf32>
      %c0_28 = arith.constant 0 : index
      %c0_29 = arith.constant 0 : index
      %33 = vector.load %arg12[%c0_28, %c0_29] : memref<1x128xf32, #tpu.memory_space<vmem>>, vector<1x128xf32>
      tpu.vector_store %arg12[%c0_28, %c0_29], %32 {strides = array<i32>} : memref<1x128xf32, #tpu.memory_space<vmem>>, vector<1x128xf32>,
      %cst_30 = arith.constant 0.000000e+00 : f32
      %34 = arith.subf %cst_30, %cst : f32
      %35 = vector.broadcast %34 : f32 to vector<1x128xf32>
      %c0_31 = arith.constant 0 : index
      %c0_32 = arith.constant 0 : index
      %36 = vector.load %arg13[%c0_31, %c0_32] : memref<1x128xf32, #tpu.memory_space<vmem>>, vector<1x128xf32>
      tpu.vector_store %arg13[%c0_31, %c0_32], %35 {strides = array<i32>} : memref<1x128xf32, #tpu.memory_space<vmem>>, vector<1x128xf32>,
    } else {
    }
    %c0 = arith.constant 0 : index
    %c0_2 = arith.constant 0 : index
    %5 = vector.load %arg4[%c0, %c0_2] : memref<8x128xf32, #tpu.memory_space<vmem>>, vector<8x128xf32>
    %c0_3 = arith.constant 0 : index
    %c0_4 = arith.constant 0 : index
    %6 = vector.load %arg5[%c0_3, %c0_4] : memref<8x128xf32, #tpu.memory_space<vmem>>, vector<8x128xf32>
    %c0_i32_5 = arith.constant 0 : i32
    %7 = arith.cmpi eq, %arg0, %c0_i32_5 : i32
    %8 = arith.extui %7 : i1 to i32
    %cst_6 = arith.constant 0x7F800000 : f32
    %c0_i32_7 = arith.constant 0 : i32
    %9 = arith.cmpi ne, %8, %c0_i32_7 : i32
    scf.if %9 {
      %23 = arith.subf %5, %6 : vector<8x128xf32>
      %c0_17 = arith.constant 0 : index
      %c0_18 = arith.constant 0 : index
      %24 = vector.load %arg9[%c0_17, %c0_18] : memref<1x128xf32, #tpu.memory_space<vmem>>, vector<1x128xf32>
      %25 = arith.mulf %23, %23 : vector<8x128xf32>
      %cst_19 = arith.constant dense<0.000000e+00> : vector<128xf32>
      %26 = vector.multi_reduction <add>, %25, %cst_19 [0] : vector<8x128xf32> to vector<128xf32>
      %27 = vector.shape_cast %26 : vector<128xf32> to vector<1x128xf32>
      %28 = arith.addf %24, %27 : vector<1x128xf32>
      %c0_20 = arith.constant 0 : index
      %c0_21 = arith.constant 0 : index
      %29 = vector.load %arg9[%c0_20, %c0_21] : memref<1x128xf32, #tpu.memory_space<vmem>>, vector<1x128xf32>
      tpu.vector_store %arg9[%c0_20, %c0_21], %28 {strides = array<i32>} : memref<1x128xf32, #tpu.memory_space<vmem>>, vector<1x128xf32>,
      %c0_i32_22 = arith.constant 0 : i32
      %30 = arith.cmpi eq, %arg1, %c0_i32_22 : i32
      %31 = arith.extui %30 : i1 to i32
      %c0_i32_23 = arith.constant 0 : i32
      %32 = arith.cmpi ne, %31, %c0_i32_23 : i32
      scf.if %32 {
        %36 = tpu.iota {dimensions = array<i32: 0>} : vector<8x128xi32>
        %37 = tpu.iota {dimensions = array<i32: 1>} : vector<8x128xi32>
        %c8_i32 = arith.constant 8 : i32
        %38 = arith.muli %arg1, %c8_i32 : i32
        %39 = vector.broadcast %38 : i32 to vector<8x128xi32>
        %40 = arith.addi %39, %36 : vector<8x128xi32>
        %c128_i32 = arith.constant 128 : i32
        %41 = vector.broadcast %c128_i32 : i32 to vector<8x128xi32>
        %42 = arith.muli %40, %41 : vector<8x128xi32>
        %43 = arith.addi %42, %37 : vector<8x128xi32>
        %c512_i32 = arith.constant 512 : i32
        %44 = vector.broadcast %c512_i32 : i32 to vector<8x128xi32>
        %45 = arith.cmpi slt, %43, %44 : vector<8x128xi32>
        %46 = vector.broadcast %cst_6 : f32 to vector<8x128xf32>
        %47 = arith.select %45, %5, %46 : vector<8x128xi1>, vector<8x128xf32>
        %cst_26 = arith.constant 0.000000e+00 : f32
        %48 = arith.subf %cst_26, %cst_6 : f32
        %49 = vector.broadcast %48 : f32 to vector<8x128xf32>
        %50 = arith.select %45, %5, %49 : vector<8x128xi1>, vector<8x128xf32>
        %51 = vector.broadcast %cst_6 : f32 to vector<8x128xf32>
        %52 = arith.select %45, %6, %51 : vector<8x128xi1>, vector<8x128xf32>
        %cst_27 = arith.constant 0.000000e+00 : f32
        %53 = arith.subf %cst_27, %cst_6 : f32
        %54 = vector.broadcast %53 : f32 to vector<8x128xf32>
        %55 = arith.select %45, %6, %54 : vector<8x128xi1>, vector<8x128xf32>
        %c0_28 = arith.constant 0 : index
        %c0_29 = arith.constant 0 : index
        %56 = vector.load %arg10[%c0_28, %c0_29] : memref<1x128xf32, #tpu.memory_space<vmem>>, vector<1x128xf32>
        %cst_30 = arith.constant dense<0x7F800000> : vector<128xf32>
        %57 = vector.multi_reduction <minimumf>, %47, %cst_30 [0] : vector<8x128xf32> to vector<128xf32>
        %58 = vector.shape_cast %57 : vector<128xf32> to vector<1x128xf32>
        %59 = arith.minimumf %56, %58 : vector<1x128xf32>
        %c0_31 = arith.constant 0 : index
        %c0_32 = arith.constant 0 : index
        %60 = vector.load %arg10[%c0_31, %c0_32] : memref<1x128xf32, #tpu.memory_space<vmem>>, vector<1x128xf32>
        tpu.vector_store %arg10[%c0_31, %c0_32], %59 {strides = array<i32>} : memref<1x128xf32, #tpu.memory_space<vmem>>, vector<1x128xf32>,
        %c0_33 = arith.constant 0 : index
        %c0_34 = arith.constant 0 : index
        %61 = vector.load %arg11[%c0_33, %c0_34] : memref<1x128xf32, #tpu.memory_space<vmem>>, vector<1x128xf32>
        %cst_35 = arith.constant dense<0xFF800000> : vector<128xf32>
        %62 = vector.multi_reduction <maximumf>, %50, %cst_35 [0] : vector<8x128xf32> to vector<128xf32>
        %63 = vector.shape_cast %62 : vector<128xf32> to vector<1x128xf32>
        %64 = arith.maximumf %61, %63 : vector<1x128xf32>
        %c0_36 = arith.constant 0 : index
        %c0_37 = arith.constant 0 : index
        %65 = vector.load %arg11[%c0_36, %c0_37] : memref<1x128xf32, #tpu.memory_space<vmem>>, vector<1x128xf32>
        tpu.vector_store %arg11[%c0_36, %c0_37], %64 {strides = array<i32>} : memref<1x128xf32, #tpu.memory_space<vmem>>, vector<1x128xf32>,
        %c0_38 = arith.constant 0 : index
        %c0_39 = arith.constant 0 : index
        %66 = vector.load %arg12[%c0_38, %c0_39] : memref<1x128xf32, #tpu.memory_space<vmem>>, vector<1x128xf32>
        %cst_40 = arith.constant dense<0x7F800000> : vector<128xf32>
        %67 = vector.multi_reduction <minimumf>, %52, %cst_40 [0] : vector<8x128xf32> to vector<128xf32>
        %68 = vector.shape_cast %67 : vector<128xf32> to vector<1x128xf32>
        %69 = arith.minimumf %66, %68 : vector<1x128xf32>
        %c0_41 = arith.constant 0 : index
        %c0_42 = arith.constant 0 : index
        %70 = vector.load %arg12[%c0_41, %c0_42] : memref<1x128xf32, #tpu.memory_space<vmem>>, vector<1x128xf32>
        tpu.vector_store %arg12[%c0_41, %c0_42], %69 {strides = array<i32>} : memref<1x128xf32, #tpu.memory_space<vmem>>, vector<1x128xf32>,
        %c0_43 = arith.constant 0 : index
        %c0_44 = arith.constant 0 : index
        %71 = vector.load %arg13[%c0_43, %c0_44] : memref<1x128xf32, #tpu.memory_space<vmem>>, vector<1x128xf32>
        %cst_45 = arith.constant dense<0xFF800000> : vector<128xf32>
        %72 = vector.multi_reduction <maximumf>, %55, %cst_45 [0] : vector<8x128xf32> to vector<128xf32>
        %73 = vector.shape_cast %72 : vector<128xf32> to vector<1x128xf32>
        %74 = arith.maximumf %71, %73 : vector<1x128xf32>
        %c0_46 = arith.constant 0 : index
        %c0_47 = arith.constant 0 : index
        %75 = vector.load %arg13[%c0_46, %c0_47] : memref<1x128xf32, #tpu.memory_space<vmem>>, vector<1x128xf32>
        tpu.vector_store %arg13[%c0_46, %c0_47], %74 {strides = array<i32>} : memref<1x128xf32, #tpu.memory_space<vmem>>, vector<1x128xf32>,
      } else {
      }
      %c0_i32_24 = arith.constant 0 : i32
      %33 = arith.cmpi ne, %arg1, %c0_i32_24 : i32
      %34 = arith.extui %33 : i1 to i32
      %c0_i32_25 = arith.constant 0 : i32
      %35 = arith.cmpi ne, %34, %c0_i32_25 : i32
      scf.if %35 {
        %c0_26 = arith.constant 0 : index
        %c0_27 = arith.constant 0 : index
        %36 = vector.load %arg10[%c0_26, %c0_27] : memref<1x128xf32, #tpu.memory_space<vmem>>, vector<1x128xf32>
        %cst_28 = arith.constant dense<0x7F800000> : vector<128xf32>
        %37 = vector.multi_reduction <minimumf>, %5, %cst_28 [0] : vector<8x128xf32> to vector<128xf32>
        %38 = vector.shape_cast %37 : vector<128xf32> to vector<1x128xf32>
        %39 = arith.minimumf %36, %38 : vector<1x128xf32>
        %c0_29 = arith.constant 0 : index
        %c0_30 = arith.constant 0 : index
        %40 = vector.load %arg10[%c0_29, %c0_30] : memref<1x128xf32, #tpu.memory_space<vmem>>, vector<1x128xf32>
        tpu.vector_store %arg10[%c0_29, %c0_30], %39 {strides = array<i32>} : memref<1x128xf32, #tpu.memory_space<vmem>>, vector<1x128xf32>,
        %c0_31 = arith.constant 0 : index
        %c0_32 = arith.constant 0 : index
        %41 = vector.load %arg11[%c0_31, %c0_32] : memref<1x128xf32, #tpu.memory_space<vmem>>, vector<1x128xf32>
        %cst_33 = arith.constant dense<0xFF800000> : vector<128xf32>
        %42 = vector.multi_reduction <maximumf>, %5, %cst_33 [0] : vector<8x128xf32> to vector<128xf32>
        %43 = vector.shape_cast %42 : vector<128xf32> to vector<1x128xf32>
        %44 = arith.maximumf %41, %43 : vector<1x128xf32>
        %c0_34 = arith.constant 0 : index
        %c0_35 = arith.constant 0 : index
        %45 = vector.load %arg11[%c0_34, %c0_35] : memref<1x128xf32, #tpu.memory_space<vmem>>, vector<1x128xf32>
        tpu.vector_store %arg11[%c0_34, %c0_35], %44 {strides = array<i32>} : memref<1x128xf32, #tpu.memory_space<vmem>>, vector<1x128xf32>,
        %c0_36 = arith.constant 0 : index
        %c0_37 = arith.constant 0 : index
        %46 = vector.load %arg12[%c0_36, %c0_37] : memref<1x128xf32, #tpu.memory_space<vmem>>, vector<1x128xf32>
        %cst_38 = arith.constant dense<0x7F800000> : vector<128xf32>
        %47 = vector.multi_reduction <minimumf>, %6, %cst_38 [0] : vector<8x128xf32> to vector<128xf32>
        %48 = vector.shape_cast %47 : vector<128xf32> to vector<1x128xf32>
        %49 = arith.minimumf %46, %48 : vector<1x128xf32>
        %c0_39 = arith.constant 0 : index
        %c0_40 = arith.constant 0 : index
        %50 = vector.load %arg12[%c0_39, %c0_40] : memref<1x128xf32, #tpu.memory_space<vmem>>, vector<1x128xf32>
        tpu.vector_store %arg12[%c0_39, %c0_40], %49 {strides = array<i32>} : memref<1x128xf32, #tpu.memory_space<vmem>>, vector<1x128xf32>,
        %c0_41 = arith.constant 0 : index
        %c0_42 = arith.constant 0 : index
        %51 = vector.load %arg13[%c0_41, %c0_42] : memref<1x128xf32, #tpu.memory_space<vmem>>, vector<1x128xf32>
        %cst_43 = arith.constant dense<0xFF800000> : vector<128xf32>
        %52 = vector.multi_reduction <maximumf>, %6, %cst_43 [0] : vector<8x128xf32> to vector<128xf32>
        %53 = vector.shape_cast %52 : vector<128xf32> to vector<1x128xf32>
        %54 = arith.maximumf %51, %53 : vector<1x128xf32>
        %c0_44 = arith.constant 0 : index
        %c0_45 = arith.constant 0 : index
        %55 = vector.load %arg13[%c0_44, %c0_45] : memref<1x128xf32, #tpu.memory_space<vmem>>, vector<1x128xf32>
        tpu.vector_store %arg13[%c0_44, %c0_45], %54 {strides = array<i32>} : memref<1x128xf32, #tpu.memory_space<vmem>>, vector<1x128xf32>,
      } else {
      }
    } else {
    }
    %c1_i32 = arith.constant 1 : i32
    %10 = arith.cmpi eq, %arg0, %c1_i32 : i32
    %c0_i32_8 = arith.constant 0 : i32
    %11 = arith.cmpi eq, %arg1, %c0_i32_8 : i32
    %12 = arith.andi %10, %11 : i1
    %13 = arith.extui %12 : i1 to i32
    %c0_i32_9 = arith.constant 0 : i32
    %14 = arith.cmpi ne, %13, %c0_i32_9 : i32
    scf.if %14 {
      %c0_17 = arith.constant 0 : index
      %c0_18 = arith.constant 0 : index
      %23 = vector.load %arg10[%c0_17, %c0_18] : memref<1x128xf32, #tpu.memory_space<vmem>>, vector<1x128xf32>
      %24 = vector.shape_cast %23 : vector<1x128xf32> to vector<1x1x128xf32>
      %cst_19 = arith.constant dense<0x7F800000> : vector<1xf32>
      %25 = vector.multi_reduction <minimumf>, %24, %cst_19 [1, 2] : vector<1x1x128xf32> to vector<1xf32>
      %26 = vector.shape_cast %25 : vector<1xf32> to vector<1x1x1xf32>
      %27 = vector.extract %26[0, 0, 0] : f32 from vector<1x1x1xf32>
      %c0_20 = arith.constant 0 : index
      %c0_21 = arith.constant 0 : index
      %28 = vector.load %arg11[%c0_20, %c0_21] : memref<1x128xf32, #tpu.memory_space<vmem>>, vector<1x128xf32>
      %29 = vector.shape_cast %28 : vector<1x128xf32> to vector<1x1x128xf32>
      %cst_22 = arith.constant dense<0xFF800000> : vector<1xf32>
      %30 = vector.multi_reduction <maximumf>, %29, %cst_22 [1, 2] : vector<1x1x128xf32> to vector<1xf32>
      %31 = vector.shape_cast %30 : vector<1xf32> to vector<1x1x1xf32>
      %32 = vector.extract %31[0, 0, 0] : f32 from vector<1x1x1xf32>
      %c0_23 = arith.constant 0 : index
      %c0_24 = arith.constant 0 : index
      %33 = vector.load %arg12[%c0_23, %c0_24] : memref<1x128xf32, #tpu.memory_space<vmem>>, vector<1x128xf32>
      %34 = vector.shape_cast %33 : vector<1x128xf32> to vector<1x1x128xf32>
      %cst_25 = arith.constant dense<0x7F800000> : vector<1xf32>
      %35 = vector.multi_reduction <minimumf>, %34, %cst_25 [1, 2] : vector<1x1x128xf32> to vector<1xf32>
      %36 = vector.shape_cast %35 : vector<1xf32> to vector<1x1x1xf32>
      %37 = vector.extract %36[0, 0, 0] : f32 from vector<1x1x1xf32>
      %c0_26 = arith.constant 0 : index
      %c0_27 = arith.constant 0 : index
      %38 = vector.load %arg13[%c0_26, %c0_27] : memref<1x128xf32, #tpu.memory_space<vmem>>, vector<1x128xf32>
      %39 = vector.shape_cast %38 : vector<1x128xf32> to vector<1x1x128xf32>
      %cst_28 = arith.constant dense<0xFF800000> : vector<1xf32>
      %40 = vector.multi_reduction <maximumf>, %39, %cst_28 [1, 2] : vector<1x1x128xf32> to vector<1xf32>
      %41 = vector.shape_cast %40 : vector<1xf32> to vector<1x1x1xf32>
      %42 = vector.extract %41[0, 0, 0] : f32 from vector<1x1x1xf32>
      %c0_29 = arith.constant 0 : index
      %43 = memref.load %arg15[%c0_29] : memref<4xf32, #tpu.memory_space<smem>>
      memref.store %27, %arg15[%c0_29] : memref<4xf32, #tpu.memory_space<smem>>
      %c1 = arith.constant 1 : index
      %44 = memref.load %arg15[%c1] : memref<4xf32, #tpu.memory_space<smem>>
      memref.store %37, %arg15[%c1] : memref<4xf32, #tpu.memory_space<smem>>
      %45 = arith.subf %32, %27 : f32
      %cst_30 = arith.constant 9.99999997E-7 : f32
      %46 = arith.addf %45, %cst_30 : f32
      %cst_31 = arith.constant 1.000000e+00 : f32
      %47 = arith.divf %cst_31, %46 : f32
      %c2 = arith.constant 2 : index
      %48 = memref.load %arg15[%c2] : memref<4xf32, #tpu.memory_space<smem>>
      memref.store %47, %arg15[%c2] : memref<4xf32, #tpu.memory_space<smem>>
      %49 = arith.subf %42, %37 : f32
      %cst_32 = arith.constant 9.99999997E-7 : f32
      %50 = arith.addf %49, %cst_32 : f32
      %cst_33 = arith.constant 1.000000e+00 : f32
      %51 = arith.divf %cst_33, %50 : f32
      %c3 = arith.constant 3 : index
      %52 = memref.load %arg15[%c3] : memref<4xf32, #tpu.memory_space<smem>>
      memref.store %51, %arg15[%c3] : memref<4xf32, #tpu.memory_space<smem>>
    } else {
    }
    %c1_i32_10 = arith.constant 1 : i32
    %15 = arith.cmpi eq, %arg0, %c1_i32_10 : i32
    %16 = arith.extui %15 : i1 to i32
    %cst_11 = arith.constant 0.000000e+00 : f32
    %c0_i32_12 = arith.constant 0 : i32
    %17 = arith.cmpi ne, %16, %c0_i32_12 : i32
    scf.if %17 {
      %c0_17 = arith.constant 0 : index
      %23 = memref.load %arg15[%c0_17] : memref<4xf32, #tpu.memory_space<smem>>
      %c1 = arith.constant 1 : index
      %24 = memref.load %arg15[%c1] : memref<4xf32, #tpu.memory_space<smem>>
      %c2 = arith.constant 2 : index
      %25 = memref.load %arg15[%c2] : memref<4xf32, #tpu.memory_space<smem>>
      %c3 = arith.constant 3 : index
      %26 = memref.load %arg15[%c3] : memref<4xf32, #tpu.memory_space<smem>>
      %c0_18 = arith.constant 0 : index
      %27 = memref.load %arg2[%c0_18] : memref<8xf32, #tpu.memory_space<smem>>
      %28 = arith.mulf %27, %25 : f32
      %c0_19 = arith.constant 0 : index
      %29 = memref.load %arg3[%c0_19] : memref<8xf32, #tpu.memory_space<smem>>
      %30 = arith.mulf %23, %28 : f32
      %31 = arith.subf %29, %30 : f32
      %c0_20 = arith.constant 0 : index
      %32 = memref.load %arg2[%c0_20] : memref<8xf32, #tpu.memory_space<smem>>
      %33 = arith.mulf %32, %26 : f32
      %c0_21 = arith.constant 0 : index
      %34 = memref.load %arg3[%c0_21] : memref<8xf32, #tpu.memory_space<smem>>
      %35 = arith.mulf %24, %33 : f32
      %36 = arith.subf %34, %35 : f32
      %37 = vector.broadcast %28 : f32 to vector<8x128xf32>
      %38 = arith.mulf %5, %37 : vector<8x128xf32>
      %39 = vector.broadcast %31 : f32 to vector<8x128xf32>
      %40 = arith.addf %38, %39 : vector<8x128xf32>
      %41 = vector.broadcast %cst_11 : f32 to vector<8x128xf32>
      %42 = arith.maximumf %40, %41 : vector<8x128xf32>
      %43 = vector.broadcast %33 : f32 to vector<8x128xf32>
      %44 = arith.mulf %6, %43 : vector<8x128xf32>
      %45 = vector.broadcast %36 : f32 to vector<8x128xf32>
      %46 = arith.addf %44, %45 : vector<8x128xf32>
      %47 = vector.broadcast %cst_11 : f32 to vector<8x128xf32>
      %48 = arith.maximumf %46, %47 : vector<8x128xf32>
      %49 = arith.subf %42, %48 : vector<8x128xf32>
      %50 = arith.mulf %49, %49 : vector<8x128xf32>
      %c1_22 = arith.constant 1 : index
      %51 = memref.load %arg2[%c1_22] : memref<8xf32, #tpu.memory_space<smem>>
      %52 = arith.mulf %51, %25 : f32
      %c1_23 = arith.constant 1 : index
      %53 = memref.load %arg3[%c1_23] : memref<8xf32, #tpu.memory_space<smem>>
      %54 = arith.mulf %23, %52 : f32
      %55 = arith.subf %53, %54 : f32
      %c1_24 = arith.constant 1 : index
      %56 = memref.load %arg2[%c1_24] : memref<8xf32, #tpu.memory_space<smem>>
      %57 = arith.mulf %56, %26 : f32
      %c1_25 = arith.constant 1 : index
      %58 = memref.load %arg3[%c1_25] : memref<8xf32, #tpu.memory_space<smem>>
      %59 = arith.mulf %24, %57 : f32
      %60 = arith.subf %58, %59 : f32
      %61 = vector.broadcast %52 : f32 to vector<8x128xf32>
      %62 = arith.mulf %5, %61 : vector<8x128xf32>
      %63 = vector.broadcast %55 : f32 to vector<8x128xf32>
      %64 = arith.addf %62, %63 : vector<8x128xf32>
      %65 = vector.broadcast %cst_11 : f32 to vector<8x128xf32>
      %66 = arith.maximumf %64, %65 : vector<8x128xf32>
      %67 = vector.broadcast %57 : f32 to vector<8x128xf32>
      %68 = arith.mulf %6, %67 : vector<8x128xf32>
      %69 = vector.broadcast %60 : f32 to vector<8x128xf32>
      %70 = arith.addf %68, %69 : vector<8x128xf32>
      %71 = vector.broadcast %cst_11 : f32 to vector<8x128xf32>
      %72 = arith.maximumf %70, %71 : vector<8x128xf32>
      %73 = arith.subf %66, %72 : vector<8x128xf32>
      %74 = arith.mulf %73, %73 : vector<8x128xf32>
      %75 = arith.addf %50, %74 : vector<8x128xf32>
      %c2_26 = arith.constant 2 : index
      %76 = memref.load %arg2[%c2_26] : memref<8xf32, #tpu.memory_space<smem>>
      %77 = arith.mulf %76, %25 : f32
      %c2_27 = arith.constant 2 : index
      %78 = memref.load %arg3[%c2_27] : memref<8xf32, #tpu.memory_space<smem>>
      %79 = arith.mulf %23, %77 : f32
      %80 = arith.subf %78, %79 : f32
      %c2_28 = arith.constant 2 : index
      %81 = memref.load %arg2[%c2_28] : memref<8xf32, #tpu.memory_space<smem>>
      %82 = arith.mulf %81, %26 : f32
      %c2_29 = arith.constant 2 : index
      %83 = memref.load %arg3[%c2_29] : memref<8xf32, #tpu.memory_space<smem>>
      %84 = arith.mulf %24, %82 : f32
      %85 = arith.subf %83, %84 : f32
      %86 = vector.broadcast %77 : f32 to vector<8x128xf32>
      %87 = arith.mulf %5, %86 : vector<8x128xf32>
      %88 = vector.broadcast %80 : f32 to vector<8x128xf32>
      %89 = arith.addf %87, %88 : vector<8x128xf32>
      %90 = vector.broadcast %cst_11 : f32 to vector<8x128xf32>
      %91 = arith.maximumf %89, %90 : vector<8x128xf32>
      %92 = vector.broadcast %82 : f32 to vector<8x128xf32>
      %93 = arith.mulf %6, %92 : vector<8x128xf32>
      %94 = vector.broadcast %85 : f32 to vector<8x128xf32>
      %95 = arith.addf %93, %94 : vector<8x128xf32>
      %96 = vector.broadcast %cst_11 : f32 to vector<8x128xf32>
      %97 = arith.maximumf %95, %96 : vector<8x128xf32>
      %98 = arith.subf %91, %97 : vector<8x128xf32>
      %99 = arith.mulf %98, %98 : vector<8x128xf32>
      %100 = arith.addf %75, %99 : vector<8x128xf32>
      %c3_30 = arith.constant 3 : index
      %101 = memref.load %arg2[%c3_30] : memref<8xf32, #tpu.memory_space<smem>>
      %102 = arith.mulf %101, %25 : f32
      %c3_31 = arith.constant 3 : index
      %103 = memref.load %arg3[%c3_31] : memref<8xf32, #tpu.memory_space<smem>>
      %104 = arith.mulf %23, %102 : f32
      %105 = arith.subf %103, %104 : f32
      %c3_32 = arith.constant 3 : index
      %106 = memref.load %arg2[%c3_32] : memref<8xf32, #tpu.memory_space<smem>>
      %107 = arith.mulf %106, %26 : f32
      %c3_33 = arith.constant 3 : index
      %108 = memref.load %arg3[%c3_33] : memref<8xf32, #tpu.memory_space<smem>>
      %109 = arith.mulf %24, %107 : f32
      %110 = arith.subf %108, %109 : f32
      %111 = vector.broadcast %102 : f32 to vector<8x128xf32>
      %112 = arith.mulf %5, %111 : vector<8x128xf32>
      %113 = vector.broadcast %105 : f32 to vector<8x128xf32>
      %114 = arith.addf %112, %113 : vector<8x128xf32>
      %115 = vector.broadcast %cst_11 : f32 to vector<8x128xf32>
      %116 = arith.maximumf %114, %115 : vector<8x128xf32>
      %117 = vector.broadcast %107 : f32 to vector<8x128xf32>
      %118 = arith.mulf %6, %117 : vector<8x128xf32>
      %119 = vector.broadcast %110 : f32 to vector<8x128xf32>
      %120 = arith.addf %118, %119 : vector<8x128xf32>
      %121 = vector.broadcast %cst_11 : f32 to vector<8x128xf32>
      %122 = arith.maximumf %120, %121 : vector<8x128xf32>
      %123 = arith.subf %116, %122 : vector<8x128xf32>
      %124 = arith.mulf %123, %123 : vector<8x128xf32>
      %125 = arith.addf %100, %124 : vector<8x128xf32>
      %c4 = arith.constant 4 : index
      %126 = memref.load %arg2[%c4] : memref<8xf32, #tpu.memory_space<smem>>
      %127 = arith.mulf %126, %25 : f32
      %c4_34 = arith.constant 4 : index
      %128 = memref.load %arg3[%c4_34] : memref<8xf32, #tpu.memory_space<smem>>
      %129 = arith.mulf %23, %127 : f32
      %130 = arith.subf %128, %129 : f32
      %c4_35 = arith.constant 4 : index
      %131 = memref.load %arg2[%c4_35] : memref<8xf32, #tpu.memory_space<smem>>
      %132 = arith.mulf %131, %26 : f32
      %c4_36 = arith.constant 4 : index
      %133 = memref.load %arg3[%c4_36] : memref<8xf32, #tpu.memory_space<smem>>
      %134 = arith.mulf %24, %132 : f32
      %135 = arith.subf %133, %134 : f32
      %136 = vector.broadcast %127 : f32 to vector<8x128xf32>
      %137 = arith.mulf %5, %136 : vector<8x128xf32>
      %138 = vector.broadcast %130 : f32 to vector<8x128xf32>
      %139 = arith.addf %137, %138 : vector<8x128xf32>
      %140 = vector.broadcast %cst_11 : f32 to vector<8x128xf32>
      %141 = arith.maximumf %139, %140 : vector<8x128xf32>
      %142 = vector.broadcast %132 : f32 to vector<8x128xf32>
      %143 = arith.mulf %6, %142 : vector<8x128xf32>
      %144 = vector.broadcast %135 : f32 to vector<8x128xf32>
      %145 = arith.addf %143, %144 : vector<8x128xf32>
      %146 = vector.broadcast %cst_11 : f32 to vector<8x128xf32>
      %147 = arith.maximumf %145, %146 : vector<8x128xf32>
      %148 = arith.subf %141, %147 : vector<8x128xf32>
      %149 = arith.mulf %148, %148 : vector<8x128xf32>
      %150 = arith.addf %125, %149 : vector<8x128xf32>
      %c5 = arith.constant 5 : index
      %151 = memref.load %arg2[%c5] : memref<8xf32, #tpu.memory_space<smem>>
      %152 = arith.mulf %151, %25 : f32
      %c5_37 = arith.constant 5 : index
      %153 = memref.load %arg3[%c5_37] : memref<8xf32, #tpu.memory_space<smem>>
      %154 = arith.mulf %23, %152 : f32
      %155 = arith.subf %153, %154 : f32
      %c5_38 = arith.constant 5 : index
      %156 = memref.load %arg2[%c5_38] : memref<8xf32, #tpu.memory_space<smem>>
      %157 = arith.mulf %156, %26 : f32
      %c5_39 = arith.constant 5 : index
      %158 = memref.load %arg3[%c5_39] : memref<8xf32, #tpu.memory_space<smem>>
      %159 = arith.mulf %24, %157 : f32
      %160 = arith.subf %158, %159 : f32
      %161 = vector.broadcast %152 : f32 to vector<8x128xf32>
      %162 = arith.mulf %5, %161 : vector<8x128xf32>
      %163 = vector.broadcast %155 : f32 to vector<8x128xf32>
      %164 = arith.addf %162, %163 : vector<8x128xf32>
      %165 = vector.broadcast %cst_11 : f32 to vector<8x128xf32>
      %166 = arith.maximumf %164, %165 : vector<8x128xf32>
      %167 = vector.broadcast %157 : f32 to vector<8x128xf32>
      %168 = arith.mulf %6, %167 : vector<8x128xf32>
      %169 = vector.broadcast %160 : f32 to vector<8x128xf32>
      %170 = arith.addf %168, %169 : vector<8x128xf32>
      %171 = vector.broadcast %cst_11 : f32 to vector<8x128xf32>
      %172 = arith.maximumf %170, %171 : vector<8x128xf32>
      %173 = arith.subf %166, %172 : vector<8x128xf32>
      %174 = arith.mulf %173, %173 : vector<8x128xf32>
      %175 = arith.addf %150, %174 : vector<8x128xf32>
      %c6 = arith.constant 6 : index
      %176 = memref.load %arg2[%c6] : memref<8xf32, #tpu.memory_space<smem>>
      %177 = arith.mulf %176, %25 : f32
      %c6_40 = arith.constant 6 : index
      %178 = memref.load %arg3[%c6_40] : memref<8xf32, #tpu.memory_space<smem>>
      %179 = arith.mulf %23, %177 : f32
      %180 = arith.subf %178, %179 : f32
      %c6_41 = arith.constant 6 : index
      %181 = memref.load %arg2[%c6_41] : memref<8xf32, #tpu.memory_space<smem>>
      %182 = arith.mulf %181, %26 : f32
      %c6_42 = arith.constant 6 : index
      %183 = memref.load %arg3[%c6_42] : memref<8xf32, #tpu.memory_space<smem>>
      %184 = arith.mulf %24, %182 : f32
      %185 = arith.subf %183, %184 : f32
      %186 = vector.broadcast %177 : f32 to vector<8x128xf32>
      %187 = arith.mulf %5, %186 : vector<8x128xf32>
      %188 = vector.broadcast %180 : f32 to vector<8x128xf32>
      %189 = arith.addf %187, %188 : vector<8x128xf32>
      %190 = vector.broadcast %cst_11 : f32 to vector<8x128xf32>
      %191 = arith.maximumf %189, %190 : vector<8x128xf32>
      %192 = vector.broadcast %182 : f32 to vector<8x128xf32>
      %193 = arith.mulf %6, %192 : vector<8x128xf32>
      %194 = vector.broadcast %185 : f32 to vector<8x128xf32>
      %195 = arith.addf %193, %194 : vector<8x128xf32>
      %196 = vector.broadcast %cst_11 : f32 to vector<8x128xf32>
      %197 = arith.maximumf %195, %196 : vector<8x128xf32>
      %198 = arith.subf %191, %197 : vector<8x128xf32>
      %199 = arith.mulf %198, %198 : vector<8x128xf32>
      %200 = arith.addf %175, %199 : vector<8x128xf32>
      %c7 = arith.constant 7 : index
      %201 = memref.load %arg2[%c7] : memref<8xf32, #tpu.memory_space<smem>>
      %202 = arith.mulf %201, %25 : f32
      %c7_43 = arith.constant 7 : index
      %203 = memref.load %arg3[%c7_43] : memref<8xf32, #tpu.memory_space<smem>>
      %204 = arith.mulf %23, %202 : f32
      %205 = arith.subf %203, %204 : f32
      %c7_44 = arith.constant 7 : index
      %206 = memref.load %arg2[%c7_44] : memref<8xf32, #tpu.memory_space<smem>>
      %207 = arith.mulf %206, %26 : f32
      %c7_45 = arith.constant 7 : index
      %208 = memref.load %arg3[%c7_45] : memref<8xf32, #tpu.memory_space<smem>>
      %209 = arith.mulf %24, %207 : f32
      %210 = arith.subf %208, %209 : f32
      %211 = vector.broadcast %202 : f32 to vector<8x128xf32>
      %212 = arith.mulf %5, %211 : vector<8x128xf32>
      %213 = vector.broadcast %205 : f32 to vector<8x128xf32>
      %214 = arith.addf %212, %213 : vector<8x128xf32>
      %215 = vector.broadcast %cst_11 : f32 to vector<8x128xf32>
      %216 = arith.maximumf %214, %215 : vector<8x128xf32>
      %217 = vector.broadcast %207 : f32 to vector<8x128xf32>
      %218 = arith.mulf %6, %217 : vector<8x128xf32>
      %219 = vector.broadcast %210 : f32 to vector<8x128xf32>
      %220 = arith.addf %218, %219 : vector<8x128xf32>
      %221 = vector.broadcast %cst_11 : f32 to vector<8x128xf32>
      %222 = arith.maximumf %220, %221 : vector<8x128xf32>
      %223 = arith.subf %216, %222 : vector<8x128xf32>
      %224 = arith.mulf %223, %223 : vector<8x128xf32>
      %225 = arith.addf %200, %224 : vector<8x128xf32>
      %c0_46 = arith.constant 0 : index
      %c0_47 = arith.constant 0 : index
      %226 = vector.load %arg14[%c0_46, %c0_47] : memref<1x128xf32, #tpu.memory_space<vmem>>, vector<1x128xf32>
      %cst_48 = arith.constant dense<0.000000e+00> : vector<128xf32>
      %227 = vector.multi_reduction <add>, %225, %cst_48 [0] : vector<8x128xf32> to vector<128xf32>
      %228 = vector.shape_cast %227 : vector<128xf32> to vector<1x128xf32>
      %229 = arith.addf %226, %228 : vector<1x128xf32>
      %c0_49 = arith.constant 0 : index
      %c0_50 = arith.constant 0 : index
      %230 = vector.load %arg14[%c0_49, %c0_50] : memref<1x128xf32, #tpu.memory_space<vmem>>, vector<1x128xf32>
      tpu.vector_store %arg14[%c0_49, %c0_50], %229 {strides = array<i32>} : memref<1x128xf32, #tpu.memory_space<vmem>>, vector<1x128xf32>,
    } else {
    }
    %c1_i32_13 = arith.constant 1 : i32
    %18 = arith.cmpi eq, %arg0, %c1_i32_13 : i32
    %c0_i32_14 = arith.constant 0 : i32
    %19 = arith.cmpi eq, %arg1, %c0_i32_14 : i32
    %20 = arith.andi %18, %19 : i1
    %21 = arith.extui %20 : i1 to i32
    %cst_15 = arith.constant 0.000000e+00 : f32
    %c0_i32_16 = arith.constant 0 : i32
    %22 = arith.cmpi ne, %21, %c0_i32_16 : i32
    scf.if %22 {
      %c0_17 = arith.constant 0 : index
      %c0_18 = arith.constant 0 : index
      %23 = vector.load %arg9[%c0_17, %c0_18] : memref<1x128xf32, #tpu.memory_space<vmem>>, vector<1x128xf32>
      %24 = vector.shape_cast %23 : vector<1x128xf32> to vector<1x1x128xf32>
      %cst_19 = arith.constant dense<0.000000e+00> : vector<1xf32>
      %25 = vector.multi_reduction <add>, %24, %cst_19 [1, 2] : vector<1x1x128xf32> to vector<1xf32>
      %26 = vector.shape_cast %25 : vector<1xf32> to vector<1x1x1xf32>
      %27 = vector.extract %26[0, 0, 0] : f32 from vector<1x1x1xf32>
      %cst_20 = arith.constant 5.120000e+02 : f32
      %28 = arith.divf %27, %cst_20 : f32
      %c0_21 = arith.constant 0 : index
      %c0_22 = arith.constant 0 : index
      %29 = vector.load %arg14[%c0_21, %c0_22] : memref<1x128xf32, #tpu.memory_space<vmem>>, vector<1x128xf32>
      %30 = vector.shape_cast %29 : vector<1x128xf32> to vector<1x1x128xf32>
      %cst_23 = arith.constant dense<0.000000e+00> : vector<1xf32>
      %31 = vector.multi_reduction <add>, %30, %cst_23 [1, 2] : vector<1x1x128xf32> to vector<1xf32>
      %32 = vector.shape_cast %31 : vector<1xf32> to vector<1x1x1xf32>
      %33 = vector.extract %32[0, 0, 0] : f32 from vector<1x1x1xf32>
      %c0_24 = arith.constant 0 : index
      %34 = memref.load %arg15[%c0_24] : memref<4xf32, #tpu.memory_space<smem>>
      %c1 = arith.constant 1 : index
      %35 = memref.load %arg15[%c1] : memref<4xf32, #tpu.memory_space<smem>>
      %c2 = arith.constant 2 : index
      %36 = memref.load %arg15[%c2] : memref<4xf32, #tpu.memory_space<smem>>
      %c3 = arith.constant 3 : index
      %37 = memref.load %arg15[%c3] : memref<4xf32, #tpu.memory_space<smem>>
      %c0_25 = arith.constant 0 : index
      %38 = memref.load %arg3[%c0_25] : memref<8xf32, #tpu.memory_space<smem>>
      %c0_26 = arith.constant 0 : index
      %39 = memref.load %arg2[%c0_26] : memref<8xf32, #tpu.memory_space<smem>>
      %40 = arith.mulf %39, %36 : f32
      %41 = arith.mulf %34, %40 : f32
      %42 = arith.subf %38, %41 : f32
      %c0_27 = arith.constant 0 : index
      %43 = memref.load %arg3[%c0_27] : memref<8xf32, #tpu.memory_space<smem>>
      %c0_28 = arith.constant 0 : index
      %44 = memref.load %arg2[%c0_28] : memref<8xf32, #tpu.memory_space<smem>>
      %45 = arith.mulf %44, %37 : f32
      %46 = arith.mulf %35, %45 : f32
      %47 = arith.subf %43, %46 : f32
      %48 = arith.maximumf %42, %cst_15 : f32
      %49 = arith.maximumf %47, %cst_15 : f32
      %50 = arith.subf %48, %49 : f32
      %51 = arith.mulf %50, %50 : f32
      %52 = arith.addf %cst_15, %51 : f32
      %c1_29 = arith.constant 1 : index
      %53 = memref.load %arg3[%c1_29] : memref<8xf32, #tpu.memory_space<smem>>
      %c1_30 = arith.constant 1 : index
      %54 = memref.load %arg2[%c1_30] : memref<8xf32, #tpu.memory_space<smem>>
      %55 = arith.mulf %54, %36 : f32
      %56 = arith.mulf %34, %55 : f32
      %57 = arith.subf %53, %56 : f32
      %c1_31 = arith.constant 1 : index
      %58 = memref.load %arg3[%c1_31] : memref<8xf32, #tpu.memory_space<smem>>
      %c1_32 = arith.constant 1 : index
      %59 = memref.load %arg2[%c1_32] : memref<8xf32, #tpu.memory_space<smem>>
      %60 = arith.mulf %59, %37 : f32
      %61 = arith.mulf %35, %60 : f32
      %62 = arith.subf %58, %61 : f32
      %63 = arith.maximumf %57, %cst_15 : f32
      %64 = arith.maximumf %62, %cst_15 : f32
      %65 = arith.subf %63, %64 : f32
      %66 = arith.mulf %65, %65 : f32
      %67 = arith.addf %52, %66 : f32
      %c2_33 = arith.constant 2 : index
      %68 = memref.load %arg3[%c2_33] : memref<8xf32, #tpu.memory_space<smem>>
      %c2_34 = arith.constant 2 : index
      %69 = memref.load %arg2[%c2_34] : memref<8xf32, #tpu.memory_space<smem>>
      %70 = arith.mulf %69, %36 : f32
      %71 = arith.mulf %34, %70 : f32
      %72 = arith.subf %68, %71 : f32
      %c2_35 = arith.constant 2 : index
      %73 = memref.load %arg3[%c2_35] : memref<8xf32, #tpu.memory_space<smem>>
      %c2_36 = arith.constant 2 : index
      %74 = memref.load %arg2[%c2_36] : memref<8xf32, #tpu.memory_space<smem>>
      %75 = arith.mulf %74, %37 : f32
      %76 = arith.mulf %35, %75 : f32
      %77 = arith.subf %73, %76 : f32
      %78 = arith.maximumf %72, %cst_15 : f32
      %79 = arith.maximumf %77, %cst_15 : f32
      %80 = arith.subf %78, %79 : f32
      %81 = arith.mulf %80, %80 : f32
      %82 = arith.addf %67, %81 : f32
      %c3_37 = arith.constant 3 : index
      %83 = memref.load %arg3[%c3_37] : memref<8xf32, #tpu.memory_space<smem>>
      %c3_38 = arith.constant 3 : index
      %84 = memref.load %arg2[%c3_38] : memref<8xf32, #tpu.memory_space<smem>>
      %85 = arith.mulf %84, %36 : f32
      %86 = arith.mulf %34, %85 : f32
      %87 = arith.subf %83, %86 : f32
      %c3_39 = arith.constant 3 : index
      %88 = memref.load %arg3[%c3_39] : memref<8xf32, #tpu.memory_space<smem>>
      %c3_40 = arith.constant 3 : index
      %89 = memref.load %arg2[%c3_40] : memref<8xf32, #tpu.memory_space<smem>>
      %90 = arith.mulf %89, %37 : f32
      %91 = arith.mulf %35, %90 : f32
      %92 = arith.subf %88, %91 : f32
      %93 = arith.maximumf %87, %cst_15 : f32
      %94 = arith.maximumf %92, %cst_15 : f32
      %95 = arith.subf %93, %94 : f32
      %96 = arith.mulf %95, %95 : f32
      %97 = arith.addf %82, %96 : f32
      %c4 = arith.constant 4 : index
      %98 = memref.load %arg3[%c4] : memref<8xf32, #tpu.memory_space<smem>>
      %c4_41 = arith.constant 4 : index
      %99 = memref.load %arg2[%c4_41] : memref<8xf32, #tpu.memory_space<smem>>
      %100 = arith.mulf %99, %36 : f32
      %101 = arith.mulf %34, %100 : f32
      %102 = arith.subf %98, %101 : f32
      %c4_42 = arith.constant 4 : index
      %103 = memref.load %arg3[%c4_42] : memref<8xf32, #tpu.memory_space<smem>>
      %c4_43 = arith.constant 4 : index
      %104 = memref.load %arg2[%c4_43] : memref<8xf32, #tpu.memory_space<smem>>
      %105 = arith.mulf %104, %37 : f32
      %106 = arith.mulf %35, %105 : f32
      %107 = arith.subf %103, %106 : f32
      %108 = arith.maximumf %102, %cst_15 : f32
      %109 = arith.maximumf %107, %cst_15 : f32
      %110 = arith.subf %108, %109 : f32
      %111 = arith.mulf %110, %110 : f32
      %112 = arith.addf %97, %111 : f32
      %c5 = arith.constant 5 : index
      %113 = memref.load %arg3[%c5] : memref<8xf32, #tpu.memory_space<smem>>
      %c5_44 = arith.constant 5 : index
      %114 = memref.load %arg2[%c5_44] : memref<8xf32, #tpu.memory_space<smem>>
      %115 = arith.mulf %114, %36 : f32
      %116 = arith.mulf %34, %115 : f32
      %117 = arith.subf %113, %116 : f32
      %c5_45 = arith.constant 5 : index
      %118 = memref.load %arg3[%c5_45] : memref<8xf32, #tpu.memory_space<smem>>
      %c5_46 = arith.constant 5 : index
      %119 = memref.load %arg2[%c5_46] : memref<8xf32, #tpu.memory_space<smem>>
      %120 = arith.mulf %119, %37 : f32
      %121 = arith.mulf %35, %120 : f32
      %122 = arith.subf %118, %121 : f32
      %123 = arith.maximumf %117, %cst_15 : f32
      %124 = arith.maximumf %122, %cst_15 : f32
      %125 = arith.subf %123, %124 : f32
      %126 = arith.mulf %125, %125 : f32
      %127 = arith.addf %112, %126 : f32
      %c6 = arith.constant 6 : index
      %128 = memref.load %arg3[%c6] : memref<8xf32, #tpu.memory_space<smem>>
      %c6_47 = arith.constant 6 : index
      %129 = memref.load %arg2[%c6_47] : memref<8xf32, #tpu.memory_space<smem>>
      %130 = arith.mulf %129, %36 : f32
      %131 = arith.mulf %34, %130 : f32
      %132 = arith.subf %128, %131 : f32
      %c6_48 = arith.constant 6 : index
      %133 = memref.load %arg3[%c6_48] : memref<8xf32, #tpu.memory_space<smem>>
      %c6_49 = arith.constant 6 : index
      %134 = memref.load %arg2[%c6_49] : memref<8xf32, #tpu.memory_space<smem>>
      %135 = arith.mulf %134, %37 : f32
      %136 = arith.mulf %35, %135 : f32
      %137 = arith.subf %133, %136 : f32
      %138 = arith.maximumf %132, %cst_15 : f32
      %139 = arith.maximumf %137, %cst_15 : f32
      %140 = arith.subf %138, %139 : f32
      %141 = arith.mulf %140, %140 : f32
      %142 = arith.addf %127, %141 : f32
      %c7 = arith.constant 7 : index
      %143 = memref.load %arg3[%c7] : memref<8xf32, #tpu.memory_space<smem>>
      %c7_50 = arith.constant 7 : index
      %144 = memref.load %arg2[%c7_50] : memref<8xf32, #tpu.memory_space<smem>>
      %145 = arith.mulf %144, %36 : f32
      %146 = arith.mulf %34, %145 : f32
      %147 = arith.subf %143, %146 : f32
      %c7_51 = arith.constant 7 : index
      %148 = memref.load %arg3[%c7_51] : memref<8xf32, #tpu.memory_space<smem>>
      %c7_52 = arith.constant 7 : index
      %149 = memref.load %arg2[%c7_52] : memref<8xf32, #tpu.memory_space<smem>>
      %150 = arith.mulf %149, %37 : f32
      %151 = arith.mulf %35, %150 : f32
      %152 = arith.subf %148, %151 : f32
      %153 = arith.maximumf %147, %cst_15 : f32
      %154 = arith.maximumf %152, %cst_15 : f32
      %155 = arith.subf %153, %154 : f32
      %156 = arith.mulf %155, %155 : f32
      %157 = arith.addf %142, %156 : f32
      %cst_53 = arith.constant 5.120000e+02 : f32
      %158 = arith.mulf %cst_53, %157 : f32
      %159 = arith.subf %33, %158 : f32
      %cst_54 = arith.constant 4.096000e+03 : f32
      %160 = arith.divf %159, %cst_54 : f32
      %c0_55 = arith.constant 0 : index
      %c0_56 = arith.constant 0 : index
      %161 = vector.load %arg6[%c0_55, %c0_56] : memref<2x32xf32, #tpu.memory_space<vmem>>, vector<2x32xf32>
      %c0_57 = arith.constant 0 : index
      %c0_58 = arith.constant 0 : index
      %162 = vector.load %arg7[%c0_57, %c0_58] : memref<2x32xf32, #tpu.memory_space<vmem>>, vector<2x32xf32>
      %cst_59 = arith.constant 1.000000e+00 : f32
      %163 = vector.broadcast %cst_59 : f32 to vector<2x32xf32>
      %164 = arith.addf %163, %162 : vector<2x32xf32>
      %165 = arith.mulf %161, %161 : vector<2x32xf32>
      %166 = arith.subf %164, %165 : vector<2x32xf32>
      %167 = math.exp %162 : vector<2x32xf32>
      %168 = arith.subf %166, %167 : vector<2x32xf32>
      %169 = vector.shape_cast %168 : vector<2x32xf32> to vector<1x2x32xf32>
      %cst_60 = arith.constant dense<0.000000e+00> : vector<1xf32>
      %170 = vector.multi_reduction <add>, %169, %cst_60 [1, 2] : vector<1x2x32xf32> to vector<1xf32>
      %171 = vector.shape_cast %170 : vector<1xf32> to vector<1x1x1xf32>
      %172 = vector.extract %171[0, 0, 0] : f32 from vector<1x1x1xf32>
      %cst_61 = arith.constant -5.000000e-01 : f32
      %173 = arith.mulf %cst_61, %172 : f32
      %cst_62 = arith.constant 3.000000e-01 : f32
      %174 = arith.mulf %160, %cst_62 : f32
      %cst_63 = arith.constant 5.000000e-01 : f32
      %175 = arith.mulf %28, %cst_63 : f32
      %176 = arith.addf %174, %175 : f32
      %cst_64 = arith.constant 5.000000e+01 : f32
      %177 = arith.mulf %176, %cst_64 : f32
      %178 = arith.addf %173, %177 : f32
      %c0_65 = arith.constant 0 : index
      %c0_66 = arith.constant 0 : index
      %179 = memref.load %arg8[%c0_65, %c0_66] : memref<1x1xf32, #tpu.memory_space<smem>>
      memref.store %178, %arg8[%c0_65, %c0_66] : memref<1x1xf32, #tpu.memory_space<smem>>
    } else {
    }
    return
  }
  func.func @transform_0(%arg0: i32, %arg1: i32, %arg2: memref<8xf32, #tpu.memory_space<smem>>, %arg3: memref<8xf32, #tpu.memory_space<smem>>) -> (i32, i32) {
    %c0_i32 = arith.constant 0 : i32
    %c0_i32_0 = arith.constant 0 : i32
    return %arg1, %c0_i32 : i32, i32
  }
  func.func @transform_1(%arg0: i32, %arg1: i32, %arg2: memref<8xf32, #tpu.memory_space<smem>>, %arg3: memref<8xf32, #tpu.memory_space<smem>>) -> (i32, i32) {
    %c0_i32 = arith.constant 0 : i32
    %c0_i32_0 = arith.constant 0 : i32
    return %arg1, %c0_i32 : i32, i32
  }
  func.func @transform_2(%arg0: i32, %arg1: i32, %arg2: memref<8xf32, #tpu.memory_space<smem>>, %arg3: memref<8xf32, #tpu.memory_space<smem>>) -> (i32, i32) {
    %c0_i32 = arith.constant 0 : i32
    %c0_i32_0 = arith.constant 0 : i32
    %c0_i32_1 = arith.constant 0 : i32
    return %c0_i32, %c0_i32_0 : i32, i32
  }
  func.func @transform_3(%arg0: i32, %arg1: i32, %arg2: memref<8xf32, #tpu.memory_space<smem>>, %arg3: memref<8xf32, #tpu.memory_space<smem>>) -> (i32, i32) {
    %c0_i32 = arith.constant 0 : i32
    %c0_i32_0 = arith.constant 0 : i32
    %c0_i32_1 = arith.constant 0 : i32
    return %c0_i32, %c0_i32_0 : i32, i32
  }
  func.func @transform_4(%arg0: i32, %arg1: i32, %arg2: memref<8xf32, #tpu.memory_space<smem>>, %arg3: memref<8xf32, #tpu.memory_space<smem>>) -> (i32, i32) {
    %c0_i32 = arith.constant 0 : i32
    %c0_i32_0 = arith.constant 0 : i32
    %c0_i32_1 = arith.constant 0 : i32
    return %c0_i32, %c0_i32_0 : i32, i32
  }
}

</mosaic_0001>

<llo_original>
// kernel: tpu_custom_call.1
$region0: #{tpu_custom_call.1}
  #allocation0 [shape = 'u32[]', space=smem, size = 0x4, offset = 0x4, fixed_abs, tag = 'smem constant byte address 0x4 - core index']
  #allocation1 [shape = 'u32[144,128]{1,0:T(1,128)}', space=vmem, size = 0x12000, scoped, tag = 'internal scratch']
  #allocation2 [shape = 'f32[1,128]{1,0:T(1,128)}', space=vmem, size = 0x200, scoped, tag = 'scratch operand']
  #allocation3 [shape = 'f32[1,128]{1,0:T(1,128)}', space=vmem, size = 0x200, scoped, tag = 'scratch operand']
  #allocation4 [shape = 'f32[1,128]{1,0:T(1,128)}', space=vmem, size = 0x200, scoped, tag = 'scratch operand']
  #allocation5 [shape = 'f32[1,128]{1,0:T(1,128)}', space=vmem, size = 0x200, scoped, tag = 'scratch operand']
  #allocation6 [shape = 'f32[1,128]{1,0:T(1,128)}', space=vmem, size = 0x200, scoped, tag = 'scratch operand']
  #allocation7 [shape = 'f32[1,128]{1,0:T(1,128)}', space=vmem, size = 0x200, scoped, tag = 'scratch operand']
  #allocation8 [shape = 'f32[4]{0:T(128)}', space=smem, size = 0x200, scoped, tag = 'scratch operand']
  #allocation9 [shape = 's32[1]{0}', space=sflag, size = 0x4, scoped, tag = 'scoped memory for tpu_custom_call.1']
  #allocation10 [shape = 'u8[512]{0}', space=smem, size = 0x200, scoped, tag = 'prefetched SMEM operand 0']
  #allocation11 [shape = 'u8[512]{0}', space=smem, size = 0x200, scoped, tag = 'prefetched SMEM operand 1']
  %s0 = inlined_call_operand.hbm [shape: f32[8], index: 0, kind: input, shape index: {}]
  %s1 = inlined_call_operand.vmem [shape: f32[8], index: 1, kind: input, shape index: {}]
  %s2 = inlined_call_operand.hbm [shape: f32[8,128], index: 2, kind: input, shape index: {}]
  %s3 = inlined_call_operand.hbm [shape: f32[8,128], index: 3, kind: input, shape index: {}]
  %s4 = inlined_call_operand.vmem [shape: f32[2,32], index: 4, kind: input, shape index: {}]
  %s5 = inlined_call_operand.vmem [shape: f32[2,32], index: 5, kind: input, shape index: {}]
  %s6 = inlined_call_operand.hbm [shape: f32[1,1], index: 6, kind: output, shape index: {}]
  %s7 = sld [smem:[#allocation0]]
  $region85: #{tpu_custom_call.1} parent=0
    _
  %s9 = ssub.s32 1, %s7
  %s10 = scalar_select 0, %s9, %s7
  %12 = dma.hbm_to_smem %s0, 16, [#allocation10], [#allocation9]
  %s13 = sshll.u32 %s1, 4
  %s14 = int_to_ptr.vmem [resolvable:$true] %s13
  %16 = dma.vmem_to_smem %s14, 16, [#allocation11], [#allocation9]
  %17 = dma.done [#allocation9], 32
  %18 = sfence
  $region1: #{tpu_custom_call.1} parent=0
    #allocation12 [shape = 'u8[4096]{0}', space=vmem, size = 0x1000, scoped, tag = 'input window, operand 2, single buffered']
    #allocation13 [shape = 's32[2]{0}', space=sflag, size = 0x8, scoped, tag = 'scoped memory for tpu_custom_call.1']
    #allocation14 [shape = 's32[2]{0}', space=sflag, size = 0x8, scoped, tag = 'scoped memory for tpu_custom_call.1']
    #allocation15 [shape = 'u8[4096]{0}', space=vmem, size = 0x1000, scoped, tag = 'input window, operand 3, single buffered']
    #allocation16 [shape = 's32[1]{0}', space=sflag, size = 0x4, scoped, tag = 'scoped memory for tpu_custom_call.1']
    #allocation17 [shape = 'u8[512]{0}', space=smem, size = 0x200, scoped, tag = 'output window, operand 0, single buffered']
    %19 = vsyncpa [#allocation13], 0
    %20 = vsyncpa [#allocation16], 0
    %21 = vsyncpa [#allocation14], 0
    loop: start=0, step=1, limit=4
    $region2: #{tpu_custom_call.1} parent=1 // loop_pre_header
      _
    $region3: #{tpu_custom_call.1} parent=1 // loop_header
      %s23 = sphi 0, %s27
      %p24 = scmp.ge.s32.totalorder %s23, 4
      %s30 = sphi 0, %s42
      %s31 = sphi 0, %s38
      %s32 = sphi 0, %s30
      %s33 = sphi 0, %s31
      %s34 = sphi 0, %s32
      %s35 = sphi 0, %s33
      %s45 = sphi 0, %s47
      %s48 = sphi 0, %s45
      %s49 = sphi 0, %s48
      %s65 = sphi 0, %s49
      %s71 = sphi 0, %s73
      %s74 = sphi 0, %s71
      %s75 = sphi 0, %s74
      %s91 = sphi 0, %s75
      %s95 = sphi 0, %s95
      %s97 = sphi 0, %s95
      %s98 = sphi 0, %s97
      %s112 = sphi 0, %s98
      %s116 = sphi 0, %s116
      %s118 = sphi 0, %s116
      %s119 = sphi 0, %s118
      %s133 = sphi 0, %s119
      %s137 = sphi 0, %s137
      %s139 = sphi 0, %s137
      %s140 = sphi 0, %s139
      %s154 = sphi 0, %s140
    $region4: #{tpu_custom_call.1} parent=1 // loop_header_branch
      %26 = sbr.rel (%p24) target = $region8
    $region5: #{tpu_custom_call.1} parent=1 // loop_body
      %s28 = ssub.s32 %s23, 1
      %s29 = ssub.s32 %s23, 2
      %s36 = sadd.s32 1, %s31
      %p37 = scmp.ge.s32.totalorder %s36, 1
      %s38 = scalar_select %p37, 0, %s36
      %s39 = sadd.s32 1, %s30
      %s40 = scalar_select %p37, %s39, %s30
      %p41 = scmp.ge.s32.totalorder %s40, 2
      %s42 = scalar_select %p41, 0, %s40
      %s43 = ssub.s32 %s31, %s38
      %p44 = scmp.eq.s32.totalorder %s43, 0
      %s46 = sadd.s32 %s45, 1
      %s47 = scalar_select %p44, %s45, %s46
      %p50 = pneg %p44
      %p51 = scmp.eq.s32.totalorder %s23, 1
      %p52 = por %p50, %p51
      %p53 = scmp.ne.s32.totalorder %s45, %s48
      %p54 = scmp.eq.s32.totalorder %s23, 0
      %p55 = por %p53, %p54
      %p56 = scmp.ne.s32.totalorder %s45, %s48
      %p57 = scmp.eq.s32.totalorder %s28, 1
      %p58 = por %p56, %p57
      %p59 = scmp.ne.s32.totalorder %s48, %s49
      %p60 = scmp.eq.s32.totalorder %s28, 0
      %p61 = por %p59, %p60
      %p62 = scmp.ne.s32.totalorder %s48, %s49
      %p63 = scmp.eq.s32.totalorder %s29, 1
      %p64 = por %p62, %p63
      %p66 = scmp.ne.s32.totalorder %s49, %s65
      %p67 = scmp.eq.s32.totalorder %s29, 0
      %p68 = por %p66, %p67
      %s69 = ssub.s32 %s31, %s38
      %p70 = scmp.eq.s32.totalorder %s69, 0
      %s72 = sadd.s32 %s71, 1
      %s73 = scalar_select %p70, %s71, %s72
      %p76 = pneg %p70
      %p77 = scmp.eq.s32.totalorder %s23, 1
      %p78 = por %p76, %p77
      %p79 = scmp.ne.s32.totalorder %s71, %s74
      %p80 = scmp.eq.s32.totalorder %s23, 0
      %p81 = por %p79, %p80
      %p82 = scmp.ne.s32.totalorder %s71, %s74
      %p83 = scmp.eq.s32.totalorder %s28, 1
      %p84 = por %p82, %p83
      %p85 = scmp.ne.s32.totalorder %s74, %s75
      %p86 = scmp.eq.s32.totalorder %s28, 0
      %p87 = por %p85, %p86
      %p88 = scmp.ne.s32.totalorder %s74, %s75
      %p89 = scmp.eq.s32.totalorder %s29, 1
      %p90 = por %p88, %p89
      %p92 = scmp.ne.s32.totalorder %s75, %s91
      %p93 = scmp.eq.s32.totalorder %s29, 0
      %p94 = por %p92, %p93
      %s96 = sadd.s32 %s95, 1
      %p99 = scmp.eq.s32.totalorder %s23, 1
      %p100 = scmp.ne.s32.totalorder %s95, %s97
      %p101 = scmp.eq.s32.totalorder %s23, 0
      %p102 = por %p100, %p101
      %p103 = scmp.ne.s32.totalorder %s95, %s97
      %p104 = scmp.eq.s32.totalorder %s28, 1
      %p105 = por %p103, %p104
      %p106 = scmp.ne.s32.totalorder %s97, %s98
      %p107 = scmp.eq.s32.totalorder %s28, 0
      %p108 = por %p106, %p107
      %p109 = scmp.ne.s32.totalorder %s97, %s98
      %p110 = scmp.eq.s32.totalorder %s29, 1
      %p111 = por %p109, %p110
      %p113 = scmp.ne.s32.totalorder %s98, %s112
      %p114 = scmp.eq.s32.totalorder %s29, 0
      %p115 = por %p113, %p114
      %s117 = sadd.s32 %s116, 1
      %p120 = scmp.eq.s32.totalorder %s23, 1
      %p121 = scmp.ne.s32.totalorder %s116, %s118
      %p122 = scmp.eq.s32.totalorder %s23, 0
      %p123 = por %p121, %p122
      %p124 = scmp.ne.s32.totalorder %s116, %s118
      %p125 = scmp.eq.s32.totalorder %s28, 1
      %p126 = por %p124, %p125
      %p127 = scmp.ne.s32.totalorder %s118, %s119
      %p128 = scmp.eq.s32.totalorder %s28, 0
      %p129 = por %p127, %p128
      %p130 = scmp.ne.s32.totalorder %s118, %s119
      %p131 = scmp.eq.s32.totalorder %s29, 1
      %p132 = por %p130, %p131
      %p134 = scmp.ne.s32.totalorder %s119, %s133
      %p135 = scmp.eq.s32.totalorder %s29, 0
      %p136 = por %p134, %p135
      %s138 = sadd.s32 %s137, 1
      %p141 = scmp.eq.s32.totalorder %s23, 1
      %p142 = scmp.ne.s32.totalorder %s137, %s139
      %p143 = scmp.eq.s32.totalorder %s23, 0
      %p144 = por %p142, %p143
      %p145 = scmp.ne.s32.totalorder %s137, %s139
      %p146 = scmp.eq.s32.totalorder %s28, 1
      %p147 = por %p145, %p146
      %p148 = scmp.ne.s32.totalorder %s139, %s140
      %p149 = scmp.eq.s32.totalorder %s28, 0
      %p150 = por %p148, %p149
      %p151 = scmp.ne.s32.totalorder %s139, %s140
      %p152 = scmp.eq.s32.totalorder %s29, 1
      %p153 = por %p151, %p152
      %p155 = scmp.ne.s32.totalorder %s140, %s154
      %p156 = scmp.eq.s32.totalorder %s29, 0
      %p157 = por %p155, %p156
      %p158 = scmp.le.s32.totalorder 1, %s23
      %p159 = scmp.lt.s32.totalorder %s23, 3
      %p160 = pnand %p158, %p159
      %p161 = pneg %p160
      // Predicated region
      $region9: #{tpu_custom_call.1} parent=5 // pred_check
        _
      $region10: #{tpu_custom_call.1} parent=5 // pred_check_branch
        %163 = sbr.rel (%p160) target = $region12
      $region11: #{tpu_custom_call.1} parent=5 // pred_region
        %s164 = ssub.s32 %s23, 1
        // Predicated region
        $region13: #{tpu_custom_call.1} parent=11 // pred_check
          %p165 = pneg %p61
        $region14: #{tpu_custom_call.1} parent=11 // pred_check_branch
          %167 = sbr.rel (%p165) target = $region16
        $region15: #{tpu_custom_call.1} parent=11 // pred_region
          %s169 = ssub.s32 128, 128
          %170 = vsyncadd [#allocation13], %s169
          %s171 = smul.addr %s33, 128
          %s172 = scalar_lea.hbm %s2, %s171
          %s174 = sshll.u32 [#allocation12], 4
          %s175 = int_to_ptr.vmem [resolvable:$true] %s174
          %177 = dma.hbm_to_vmem [thread:$0]  %s172, 128, %s175, [#allocation13]
        $region16: #{tpu_custom_call.1} parent=11 // pred_fallthru
          _
        // Predicated region
        $region17: #{tpu_custom_call.1} parent=11 // pred_check
          %p178 = pneg %p87
        $region18: #{tpu_custom_call.1} parent=11 // pred_check_branch
          %180 = sbr.rel (%p178) target = $region20
        $region19: #{tpu_custom_call.1} parent=11 // pred_region
          %s182 = ssub.s32 128, 128
          %183 = vsyncadd [#allocation16], %s182
          %s184 = smul.addr %s33, 128
          %s185 = scalar_lea.hbm %s3, %s184
          %s187 = sshll.u32 [#allocation15], 4
          %s188 = int_to_ptr.vmem [resolvable:$true] %s187
          %190 = dma.hbm_to_vmem [thread:$0]  %s185, 128, %s188, [#allocation16]
        $region20: #{tpu_custom_call.1} parent=11 // pred_fallthru
          _
        // Predicated region
        $region21: #{tpu_custom_call.1} parent=11 // pred_check
          %p191 = pneg %p108
        $region22: #{tpu_custom_call.1} parent=11 // pred_check_branch
          %193 = sbr.rel (%p191) target = $region24
        $region23: #{tpu_custom_call.1} parent=11 // pred_region
          _
        $region24: #{tpu_custom_call.1} parent=11 // pred_fallthru
          _
        // Predicated region
        $region25: #{tpu_custom_call.1} parent=11 // pred_check
          %p194 = pneg %p129
        $region26: #{tpu_custom_call.1} parent=11 // pred_check_branch
          %196 = sbr.rel (%p194) target = $region28
        $region27: #{tpu_custom_call.1} parent=11 // pred_region
          _
        $region28: #{tpu_custom_call.1} parent=11 // pred_fallthru
          _
      $region12: #{tpu_custom_call.1} parent=5 // pred_fallthru
        _
      %p197 = scmp.lt.s32.totalorder %s23, 2
      // Predicated region
      $region29: #{tpu_custom_call.1} parent=5 // pred_check
        %p198 = pneg %p197
      $region30: #{tpu_custom_call.1} parent=5 // pred_check_branch
        %200 = sbr.rel (%p198) target = $region32
      $region31: #{tpu_custom_call.1} parent=5 // pred_region
        _
      $region32: #{tpu_custom_call.1} parent=5 // pred_fallthru
        _
      %p201 = scmp.le.s32.totalorder 1, %s23
      %p202 = scmp.lt.s32.totalorder %s23, 3
      %p203 = pnand %p201, %p202
      %p204 = pneg %p203
      // Predicated region
      $region33: #{tpu_custom_call.1} parent=5 // pred_check
        _
      $region34: #{tpu_custom_call.1} parent=5 // pred_check_branch
        %206 = sbr.rel (%p203) target = $region36
      $region35: #{tpu_custom_call.1} parent=5 // pred_region
        %s207 = ssub.s32 %s23, 1
        // Predicated region
        $region37: #{tpu_custom_call.1} parent=35 // pred_check
          %p208 = pneg %p61
        $region38: #{tpu_custom_call.1} parent=35 // pred_check_branch
          %210 = sbr.rel (%p208) target = $region40
        $region39: #{tpu_custom_call.1} parent=35 // pred_region
          %211 = dma.done [#allocation13], 128
        $region40: #{tpu_custom_call.1} parent=35 // pred_fallthru
          _
        // Predicated region
        $region41: #{tpu_custom_call.1} parent=35 // pred_check
          %p212 = pneg %p87
        $region42: #{tpu_custom_call.1} parent=35 // pred_check_branch
          %214 = sbr.rel (%p212) target = $region44
        $region43: #{tpu_custom_call.1} parent=35 // pred_region
          %215 = dma.done [#allocation16], 128
        $region44: #{tpu_custom_call.1} parent=35 // pred_fallthru
          _
        %p216 = pneg %p61
        %p217 = pneg %p58
        %p218 = pneg %p87
        %p219 = pneg %p84
        %p220 = pneg %p108
        %p221 = pneg %p105
        %p222 = pneg %p129
        %p223 = pneg %p126
        %p224 = pneg %p150
        %p225 = pneg %p147
        %p226 = scmp.eq.s32.totalorder %s32, 0
        %p227 = scmp.eq.s32.totalorder %s33, 0
        %p228 = pnand %p226, %p227
        %p229 = pneg %p228
        // Predicated region
        $region45: #{tpu_custom_call.1} parent=35 // pred_check
          _
        $region46: #{tpu_custom_call.1} parent=35 // pred_check_branch
          %231 = sbr.rel (%p228) target = $region48
        $region47: #{tpu_custom_call.1} parent=35 // pred_region
          %232 = vst [vmem:[#allocation2] sm:$0x1] 0.0
          %233 = vst [vmem:[#allocation7] sm:$0x1] 0.0
          %234 = vst [vmem:[#allocation3] sm:$0x1] inf
          %235 = vst [vmem:[#allocation4] sm:$0x1] -inf
          %236 = vst [vmem:[#allocation5] sm:$0x1] inf
          %237 = vst [vmem:[#allocation6] sm:$0x1] -inf
        $region48: #{tpu_custom_call.1} parent=35 // pred_fallthru
          _
        %v238 = vld [vmem:[#allocation12] sm:$0xff]
        %v239 = vld [vmem:[#allocation15] sm:$0xff]
        // Predicated region
        $region49: #{tpu_custom_call.1} parent=35 // pred_check
          %p240 = pneg %p226
        $region50: #{tpu_custom_call.1} parent=35 // pred_check_branch
          %242 = sbr.rel (%p240) target = $region52
        $region51: #{tpu_custom_call.1} parent=35 // pred_region
          %v243 = vsub.f32 %v238, %v239
          %v244 = vld [vmem:[#allocation2] sm:$0x1]
          %v245 = vmul.f32 %v243, %v243
          %v246 = vrot.slane %v245, 4
          %v247 = vadd.f32 %v245, %v246
          %v248 = vrot.slane %v247, 2
          %v249 = vadd.f32 %v247, %v248
          %v250 = vrot.slane %v249, 1
          %v251 = vadd.f32 %v249, %v250
          %v252 = vadd.f32 %v244, %v251
          %253 = vst [vmem:[#allocation2] sm:$0x1] %v252
          // Predicated region
          $region53: #{tpu_custom_call.1} parent=51 // pred_check
            %p254 = pneg %p227
          $region54: #{tpu_custom_call.1} parent=51 // pred_check_branch
            %256 = sbr.rel (%p254) target = $region56
          $region55: #{tpu_custom_call.1} parent=51 // pred_region
            %v257 = vlaneseq
            %v258 = vshrl.u32 %v257, 7
            %v259 = vlaneseq
            %v260 = vand.u32 %v259, 127
            %s261 = smul.u32 %s33, 8
            %v262 = vstv %s261
            %v263 = vadd.s32 %v262, %v258
            %v264 = vmul.u32 %v263, 128
            %v265 = vadd.s32 %v264, %v260
            %vm266 = vcmp.lt.s32.totalorder %v265, 512
            %v267 = vsel %vm266, %v238, inf
            %v268 = vsel %vm266, %v238, -inf
            %v269 = vsel %vm266, %v239, inf
            %v270 = vsel %vm266, %v239, -inf
            %v271 = vld [vmem:[#allocation3] sm:$0x1]
            %v272 = vrot.slane %v267, 4
            %v273 = vmin.f32 %v267, %v272
            %v274 = vrot.slane %v273, 2
            %v275 = vmin.f32 %v273, %v274
            %v276 = vrot.slane %v275, 1
            %v277 = vmin.f32 %v275, %v276
            %v278 = vmin.f32 %v271, %v277
            %279 = vst [vmem:[#allocation3] sm:$0x1] %v278
            %v280 = vld [vmem:[#allocation4] sm:$0x1]
            %v281 = vrot.slane %v268, 4
            %v282 = vmax.f32 %v268, %v281
            %v283 = vrot.slane %v282, 2
            %v284 = vmax.f32 %v282, %v283
            %v285 = vrot.slane %v284, 1
            %v286 = vmax.f32 %v284, %v285
            %v287 = vmax.f32 %v280, %v286
            %288 = vst [vmem:[#allocation4] sm:$0x1] %v287
            %v289 = vld [vmem:[#allocation5] sm:$0x1]
            %v290 = vrot.slane %v269, 4
            %v291 = vmin.f32 %v269, %v290
            %v292 = vrot.slane %v291, 2
            %v293 = vmin.f32 %v291, %v292
            %v294 = vrot.slane %v293, 1
            %v295 = vmin.f32 %v293, %v294
            %v296 = vmin.f32 %v289, %v295
            %297 = vst [vmem:[#allocation5] sm:$0x1] %v296
            %v298 = vld [vmem:[#allocation6] sm:$0x1]
            %v299 = vrot.slane %v270, 4
            %v300 = vmax.f32 %v270, %v299
            %v301 = vrot.slane %v300, 2
            %v302 = vmax.f32 %v300, %v301
            %v303 = vrot.slane %v302, 1
            %v304 = vmax.f32 %v302, %v303
            %v305 = vmax.f32 %v298, %v304
            %306 = vst [vmem:[#allocation6] sm:$0x1] %v305
          $region56: #{tpu_custom_call.1} parent=51 // pred_fallthru
            _
          %p307 = scmp.ne.s32.totalorder %s33, 0
          // Predicated region
          $region57: #{tpu_custom_call.1} parent=51 // pred_check
            %p308 = pneg %p307
          $region58: #{tpu_custom_call.1} parent=51 // pred_check_branch
            %310 = sbr.rel (%p308) target = $region60
          $region59: #{tpu_custom_call.1} parent=51 // pred_region
            %v311 = vld [vmem:[#allocation3] sm:$0x1]
            %v312 = vrot.slane %v238, 4
            %v313 = vmin.f32 %v238, %v312
            %v314 = vrot.slane %v313, 2
            %v315 = vmin.f32 %v313, %v314
            %v316 = vrot.slane %v315, 1
            %v317 = vmin.f32 %v315, %v316
            %v318 = vmin.f32 %v311, %v317
            %319 = vst [vmem:[#allocation3] sm:$0x1] %v318
            %v320 = vld [vmem:[#allocation4] sm:$0x1]
            %v321 = vrot.slane %v238, 4
            %v322 = vmax.f32 %v238, %v321
            %v323 = vrot.slane %v322, 2
            %v324 = vmax.f32 %v322, %v323
            %v325 = vrot.slane %v324, 1
            %v326 = vmax.f32 %v324, %v325
            %v327 = vmax.f32 %v320, %v326
            %328 = vst [vmem:[#allocation4] sm:$0x1] %v327
            %v329 = vld [vmem:[#allocation5] sm:$0x1]
            %v330 = vrot.slane %v239, 4
            %v331 = vmin.f32 %v239, %v330
            %v332 = vrot.slane %v331, 2
            %v333 = vmin.f32 %v331, %v332
            %v334 = vrot.slane %v333, 1
            %v335 = vmin.f32 %v333, %v334
            %v336 = vmin.f32 %v329, %v335
            %337 = vst [vmem:[#allocation5] sm:$0x1] %v336
            %v338 = vld [vmem:[#allocation6] sm:$0x1]
            %v339 = vrot.slane %v239, 4
            %v340 = vmax.f32 %v239, %v339
            %v341 = vrot.slane %v340, 2
            %v342 = vmax.f32 %v340, %v341
            %v343 = vrot.slane %v342, 1
            %v344 = vmax.f32 %v342, %v343
            %v345 = vmax.f32 %v338, %v344
            %346 = vst [vmem:[#allocation6] sm:$0x1] %v345
          $region60: #{tpu_custom_call.1} parent=51 // pred_fallthru
            _
        $region52: #{tpu_custom_call.1} parent=35 // pred_fallthru
          _
        %p347 = scmp.eq.s32.totalorder %s32, 1
        %p348 = pnand %p347, %p227
        %p349 = pneg %p348
        // Predicated region
        $region61: #{tpu_custom_call.1} parent=35 // pred_check
          _
        $region62: #{tpu_custom_call.1} parent=35 // pred_check_branch
          %351 = sbr.rel (%p348) target = $region64
        $region63: #{tpu_custom_call.1} parent=35 // pred_region
          %v352 = vld [vmem:[#allocation3] sm:$0x1]
          %vm353 = vcmask 1040384
          %v354 = vsel %vm353, %v352, inf
          %355 = vmin.xlane.f32.xlu0 %v354
          %v356 = vpop.xlane.xlu0 %355
          %v357 = vrot.slane %v356, 4
          %v358 = vmin.f32 %v356, %v357
          %v359 = vrot.slane %v358, 2
          %v360 = vmin.f32 %v358, %v359
          %v361 = vrot.slane %v360, 1
          %v362 = vmin.f32 %v360, %v361
          %s363 = vtos %v362
          %v364 = vld [vmem:[#allocation4] sm:$0x1]
          %v365 = vsel %vm353, %v364, -inf
          %366 = vmax.xlane.f32.xlu0 %v365
          %v367 = vpop.xlane.xlu0 %366
          %v368 = vrot.slane %v367, 4
          %v369 = vmax.f32 %v367, %v368
          %v370 = vrot.slane %v369, 2
          %v371 = vmax.f32 %v369, %v370
          %v372 = vrot.slane %v371, 1
          %v373 = vmax.f32 %v371, %v372
          %s374 = vtos %v373
          %v375 = vld [vmem:[#allocation5] sm:$0x1]
          %v376 = vsel %vm353, %v375, inf
          %377 = vmin.xlane.f32.xlu0 %v376
          %v378 = vpop.xlane.xlu0 %377
          %v379 = vrot.slane %v378, 4
          %v380 = vmin.f32 %v378, %v379
          %v381 = vrot.slane %v380, 2
          %v382 = vmin.f32 %v380, %v381
          %v383 = vrot.slane %v382, 1
          %v384 = vmin.f32 %v382, %v383
          %s385 = vtos %v384
          %v386 = vld [vmem:[#allocation6] sm:$0x1]
          %v387 = vsel %vm353, %v386, -inf
          %388 = vmax.xlane.f32.xlu0 %v387
          %v389 = vpop.xlane.xlu0 %388
          %v390 = vrot.slane %v389, 4
          %v391 = vmax.f32 %v389, %v390
          %v392 = vrot.slane %v391, 2
          %v393 = vmax.f32 %v391, %v392
          %v394 = vrot.slane %v393, 1
          %v395 = vmax.f32 %v393, %v394
          %s396 = vtos %v395
          %s397 = scalar_lea.smem [#allocation8], 0
          %398 = sst [smem:[%s397]] %s363
          %s399 = scalar_lea.smem [#allocation8], 1
          %400 = sst [smem:[%s399]] %s385
          %s401 = ssub.f32 %s374, %s363
          %s402 = sadd.f32 %s401, 1e-06
          %v403 = vstv %s402
          %v404 = vrcp.pop %v403
          %s405 = vtos %v404
          %s406 = scalar_lea.smem [#allocation8], 2
          %407 = sst [smem:[%s406]] %s405
          %s408 = ssub.f32 %s396, %s385
          %s409 = sadd.f32 %s408, 1e-06
          %v410 = vstv %s409
          %v411 = vrcp.pop %v410
          %s412 = vtos %v411
          %s413 = scalar_lea.smem [#allocation8], 3
          %414 = sst [smem:[%s413]] %s412
        $region64: #{tpu_custom_call.1} parent=35 // pred_fallthru
          _
        // Predicated region
        $region65: #{tpu_custom_call.1} parent=35 // pred_check
          %p415 = pneg %p347
        $region66: #{tpu_custom_call.1} parent=35 // pred_check_branch
          %417 = sbr.rel (%p415) target = $region68
        $region67: #{tpu_custom_call.1} parent=35 // pred_region
          %s418 = sld [smem:[#allocation8]]
          %s419 = sld [smem:[#allocation8 + $0x1]]
          %s420 = sld [smem:[#allocation8 + $0x2]]
          %s421 = sld [smem:[#allocation8 + $0x3]]
          %s422 = sld [smem:[#allocation10]]
          %s423 = smul.f32 %s422, %s420
          %s424 = sld [smem:[#allocation11]]
          %s425 = smul.f32 %s418, %s423
          %s426 = ssub.f32 %s424, %s425
          %s427 = smul.f32 %s422, %s421
          %s428 = smul.f32 %s419, %s427
          %s429 = ssub.f32 %s424, %s428
          %v430 = vstv %s423
          %v431 = vmul.f32 %v238, %v430
          %v432 = vstv %s426
          %v433 = vadd.f32 %v431, %v432
          %v434 = vmax.f32 %v433, 0.0
          %v435 = vstv %s427
          %v436 = vmul.f32 %v239, %v435
          %v437 = vstv %s429
          %v438 = vadd.f32 %v436, %v437
          %v439 = vmax.f32 %v438, 0.0
          %v440 = vsub.f32 %v434, %v439
          %v441 = vmul.f32 %v440, %v440
          %s442 = sld [smem:[#allocation10 + $0x1]]
          %s443 = smul.f32 %s442, %s420
          %s444 = sld [smem:[#allocation11 + $0x1]]
          %s445 = smul.f32 %s418, %s443
          %s446 = ssub.f32 %s444, %s445
          %s447 = smul.f32 %s442, %s421
          %s448 = smul.f32 %s419, %s447
          %s449 = ssub.f32 %s444, %s448
          %v450 = vstv %s443
          %v451 = vmul.f32 %v238, %v450
          %v452 = vstv %s446
          %v453 = vadd.f32 %v451, %v452
          %v454 = vmax.f32 %v453, 0.0
          %v455 = vstv %s447
          %v456 = vmul.f32 %v239, %v455
          %v457 = vstv %s449
          %v458 = vadd.f32 %v456, %v457
          %v459 = vmax.f32 %v458, 0.0
          %v460 = vsub.f32 %v454, %v459
          %v461 = vmul.f32 %v460, %v460
          %v462 = vadd.f32 %v441, %v461
          %s463 = sld [smem:[#allocation10 + $0x2]]
          %s464 = smul.f32 %s463, %s420
          %s465 = sld [smem:[#allocation11 + $0x2]]
          %s466 = smul.f32 %s418, %s464
          %s467 = ssub.f32 %s465, %s466
          %s468 = smul.f32 %s463, %s421
          %s469 = smul.f32 %s419, %s468
          %s470 = ssub.f32 %s465, %s469
          %v471 = vstv %s464
          %v472 = vmul.f32 %v238, %v471
          %v473 = vstv %s467
          %v474 = vadd.f32 %v472, %v473
          %v475 = vmax.f32 %v474, 0.0
          %v476 = vstv %s468
          %v477 = vmul.f32 %v239, %v476
          %v478 = vstv %s470
          %v479 = vadd.f32 %v477, %v478
          %v480 = vmax.f32 %v479, 0.0
          %v481 = vsub.f32 %v475, %v480
          %v482 = vmul.f32 %v481, %v481
          %v483 = vadd.f32 %v462, %v482
          %s484 = sld [smem:[#allocation10 + $0x3]]
          %s485 = smul.f32 %s484, %s420
          %s486 = sld [smem:[#allocation11 + $0x3]]
          %s487 = smul.f32 %s418, %s485
          %s488 = ssub.f32 %s486, %s487
          %s489 = smul.f32 %s484, %s421
          %s490 = smul.f32 %s419, %s489
          %s491 = ssub.f32 %s486, %s490
          %v492 = vstv %s485
          %v493 = vmul.f32 %v238, %v492
          %v494 = vstv %s488
          %v495 = vadd.f32 %v493, %v494
          %v496 = vmax.f32 %v495, 0.0
          %v497 = vstv %s489
          %v498 = vmul.f32 %v239, %v497
          %v499 = vstv %s491
          %v500 = vadd.f32 %v498, %v499
          %v501 = vmax.f32 %v500, 0.0
          %v502 = vsub.f32 %v496, %v501
          %v503 = vmul.f32 %v502, %v502
          %v504 = vadd.f32 %v483, %v503
          %s505 = sld [smem:[#allocation10 + $0x4]]
          %s506 = smul.f32 %s505, %s420
          %s507 = sld [smem:[#allocation11 + $0x4]]
          %s508 = smul.f32 %s418, %s506
          %s509 = ssub.f32 %s507, %s508
          %s510 = smul.f32 %s505, %s421
          %s511 = smul.f32 %s419, %s510
          %s512 = ssub.f32 %s507, %s511
          %v513 = vstv %s506
          %v514 = vmul.f32 %v238, %v513
          %v515 = vstv %s509
          %v516 = vadd.f32 %v514, %v515
          %v517 = vmax.f32 %v516, 0.0
          %v518 = vstv %s510
          %v519 = vmul.f32 %v239, %v518
          %v520 = vstv %s512
          %v521 = vadd.f32 %v519, %v520
          %v522 = vmax.f32 %v521, 0.0
          %v523 = vsub.f32 %v517, %v522
          %v524 = vmul.f32 %v523, %v523
          %v525 = vadd.f32 %v504, %v524
          %s526 = sld [smem:[#allocation10 + $0x5]]
          %s527 = smul.f32 %s526, %s420
          %s528 = sld [smem:[#allocation11 + $0x5]]
          %s529 = smul.f32 %s418, %s527
          %s530 = ssub.f32 %s528, %s529
          %s531 = smul.f32 %s526, %s421
          %s532 = smul.f32 %s419, %s531
          %s533 = ssub.f32 %s528, %s532
          %v534 = vstv %s527
          %v535 = vmul.f32 %v238, %v534
          %v536 = vstv %s530
          %v537 = vadd.f32 %v535, %v536
          %v538 = vmax.f32 %v537, 0.0
          %v539 = vstv %s531
          %v540 = vmul.f32 %v239, %v539
          %v541 = vstv %s533
          %v542 = vadd.f32 %v540, %v541
          %v543 = vmax.f32 %v542, 0.0
          %v544 = vsub.f32 %v538, %v543
          %v545 = vmul.f32 %v544, %v544
          %v546 = vadd.f32 %v525, %v545
          %s547 = sld [smem:[#allocation10 + $0x6]]
          %s548 = smul.f32 %s547, %s420
          %s549 = sld [smem:[#allocation11 + $0x6]]
          %s550 = smul.f32 %s418, %s548
          %s551 = ssub.f32 %s549, %s550
          %s552 = smul.f32 %s547, %s421
          %s553 = smul.f32 %s419, %s552
          %s554 = ssub.f32 %s549, %s553
          %v555 = vstv %s548
          %v556 = vmul.f32 %v238, %v555
          %v557 = vstv %s551
          %v558 = vadd.f32 %v556, %v557
          %v559 = vmax.f32 %v558, 0.0
          %v560 = vstv %s552
          %v561 = vmul.f32 %v239, %v560
          %v562 = vstv %s554
          %v563 = vadd.f32 %v561, %v562
          %v564 = vmax.f32 %v563, 0.0
          %v565 = vsub.f32 %v559, %v564
          %v566 = vmul.f32 %v565, %v565
          %v567 = vadd.f32 %v546, %v566
          %s568 = sld [smem:[#allocation10 + $0x7]]
          %s569 = smul.f32 %s568, %s420
          %s570 = sld [smem:[#allocation11 + $0x7]]
          %s571 = smul.f32 %s418, %s569
          %s572 = ssub.f32 %s570, %s571
          %s573 = smul.f32 %s568, %s421
          %s574 = smul.f32 %s419, %s573
          %s575 = ssub.f32 %s570, %s574
          %v576 = vstv %s569
          %v577 = vmul.f32 %v238, %v576
          %v578 = vstv %s572
          %v579 = vadd.f32 %v577, %v578
          %v580 = vmax.f32 %v579, 0.0
          %v581 = vstv %s573
          %v582 = vmul.f32 %v239, %v581
          %v583 = vstv %s575
          %v584 = vadd.f32 %v582, %v583
          %v585 = vmax.f32 %v584, 0.0
          %v586 = vsub.f32 %v580, %v585
          %v587 = vmul.f32 %v586, %v586
          %v588 = vadd.f32 %v567, %v587
          %v589 = vld [vmem:[#allocation7] sm:$0x1]
          %v590 = vrot.slane %v588, 4
          %v591 = vadd.f32 %v588, %v590
          %v592 = vrot.slane %v591, 2
          %v593 = vadd.f32 %v591, %v592
          %v594 = vrot.slane %v593, 1
          %v595 = vadd.f32 %v593, %v594
          %v596 = vadd.f32 %v589, %v595
          %597 = vst [vmem:[#allocation7] sm:$0x1] %v596
        $region68: #{tpu_custom_call.1} parent=35 // pred_fallthru
          _
        // Predicated region
        $region69: #{tpu_custom_call.1} parent=35 // pred_check
          _
        $region70: #{tpu_custom_call.1} parent=35 // pred_check_branch
          %599 = sbr.rel (%p348) target = $region72
        $region71: #{tpu_custom_call.1} parent=35 // pred_region
          %v600 = vld [vmem:[#allocation2] sm:$0x1]
          %vm601 = vcmask 1040384
          %v602 = vsel %vm601, %v600, 0.0
          %603 = vadd.xlane.f32.xlu0 %v602
          %v604 = vpop.xlane.xlu0 %603
          %v605 = vrot.slane %v604, 4
          %v606 = vadd.f32 %v604, %v605
          %v607 = vrot.slane %v606, 2
          %v608 = vadd.f32 %v606, %v607
          %v609 = vrot.slane %v608, 1
          %v610 = vadd.f32 %v608, %v609
          %s611 = vtos %v610
          %v612 = vrcp.pop 512.0
          %s613 = vtos %v612
          %s614 = smul.f32 %s611, %s613
          %v615 = vld [vmem:[#allocation7] sm:$0x1]
          %v616 = vsel %vm601, %v615, 0.0
          %617 = vadd.xlane.f32.xlu0 %v616
          %v618 = vpop.xlane.xlu0 %617
          %v619 = vrot.slane %v618, 4
          %v620 = vadd.f32 %v618, %v619
          %v621 = vrot.slane %v620, 2
          %v622 = vadd.f32 %v620, %v621
          %v623 = vrot.slane %v622, 1
          %v624 = vadd.f32 %v622, %v623
          %s625 = vtos %v624
          %s626 = sld [smem:[#allocation8]]
          %s627 = sld [smem:[#allocation8 + $0x1]]
          %s628 = sld [smem:[#allocation8 + $0x2]]
          %s629 = sld [smem:[#allocation8 + $0x3]]
          %s630 = sld [smem:[#allocation11]]
          %s631 = sld [smem:[#allocation10]]
          %s632 = smul.f32 %s631, %s628
          %s633 = smul.f32 %s626, %s632
          %s634 = ssub.f32 %s630, %s633
          %s635 = smul.f32 %s631, %s629
          %s636 = smul.f32 %s627, %s635
          %s637 = ssub.f32 %s630, %s636
          %s638 = smax.f32 %s634, 0.0
          %s639 = smax.f32 %s637, 0.0
          %s640 = ssub.f32 %s638, %s639
          %s641 = smul.f32 %s640, %s640
          %s642 = sadd.f32 %s641, 0.0
          %s643 = sld [smem:[#allocation11 + $0x1]]
          %s644 = sld [smem:[#allocation10 + $0x1]]
          %s645 = smul.f32 %s644, %s628
          %s646 = smul.f32 %s626, %s645
          %s647 = ssub.f32 %s643, %s646
          %s648 = smul.f32 %s644, %s629
          %s649 = smul.f32 %s627, %s648
          %s650 = ssub.f32 %s643, %s649
          %s651 = smax.f32 %s647, 0.0
          %s652 = smax.f32 %s650, 0.0
          %s653 = ssub.f32 %s651, %s652
          %s654 = smul.f32 %s653, %s653
          %s655 = sadd.f32 %s642, %s654
          %s656 = sld [smem:[#allocation11 + $0x2]]
          %s657 = sld [smem:[#allocation10 + $0x2]]
          %s658 = smul.f32 %s657, %s628
          %s659 = smul.f32 %s626, %s658
          %s660 = ssub.f32 %s656, %s659
          %s661 = smul.f32 %s657, %s629
          %s662 = smul.f32 %s627, %s661
          %s663 = ssub.f32 %s656, %s662
          %s664 = smax.f32 %s660, 0.0
          %s665 = smax.f32 %s663, 0.0
          %s666 = ssub.f32 %s664, %s665
          %s667 = smul.f32 %s666, %s666
          %s668 = sadd.f32 %s655, %s667
          %s669 = sld [smem:[#allocation11 + $0x3]]
          %s670 = sld [smem:[#allocation10 + $0x3]]
          %s671 = smul.f32 %s670, %s628
          %s672 = smul.f32 %s626, %s671
          %s673 = ssub.f32 %s669, %s672
          %s674 = smul.f32 %s670, %s629
          %s675 = smul.f32 %s627, %s674
          %s676 = ssub.f32 %s669, %s675
          %s677 = smax.f32 %s673, 0.0
          %s678 = smax.f32 %s676, 0.0
          %s679 = ssub.f32 %s677, %s678
          %s680 = smul.f32 %s679, %s679
          %s681 = sadd.f32 %s668, %s680
          %s682 = sld [smem:[#allocation11 + $0x4]]
          %s683 = sld [smem:[#allocation10 + $0x4]]
          %s684 = smul.f32 %s683, %s628
          %s685 = smul.f32 %s626, %s684
          %s686 = ssub.f32 %s682, %s685
          %s687 = smul.f32 %s683, %s629
          %s688 = smul.f32 %s627, %s687
          %s689 = ssub.f32 %s682, %s688
          %s690 = smax.f32 %s686, 0.0
          %s691 = smax.f32 %s689, 0.0
          %s692 = ssub.f32 %s690, %s691
          %s693 = smul.f32 %s692, %s692
          %s694 = sadd.f32 %s681, %s693
          %s695 = sld [smem:[#allocation11 + $0x5]]
          %s696 = sld [smem:[#allocation10 + $0x5]]
          %s697 = smul.f32 %s696, %s628
          %s698 = smul.f32 %s626, %s697
          %s699 = ssub.f32 %s695, %s698
          %s700 = smul.f32 %s696, %s629
          %s701 = smul.f32 %s627, %s700
          %s702 = ssub.f32 %s695, %s701
          %s703 = smax.f32 %s699, 0.0
          %s704 = smax.f32 %s702, 0.0
          %s705 = ssub.f32 %s703, %s704
          %s706 = smul.f32 %s705, %s705
          %s707 = sadd.f32 %s694, %s706
          %s708 = sld [smem:[#allocation11 + $0x6]]
          %s709 = sld [smem:[#allocation10 + $0x6]]
          %s710 = smul.f32 %s709, %s628
          %s711 = smul.f32 %s626, %s710
          %s712 = ssub.f32 %s708, %s711
          %s713 = smul.f32 %s709, %s629
          %s714 = smul.f32 %s627, %s713
          %s715 = ssub.f32 %s708, %s714
          %s716 = smax.f32 %s712, 0.0
          %s717 = smax.f32 %s715, 0.0
          %s718 = ssub.f32 %s716, %s717
          %s719 = smul.f32 %s718, %s718
          %s720 = sadd.f32 %s707, %s719
          %s721 = sld [smem:[#allocation11 + $0x7]]
          %s722 = sld [smem:[#allocation10 + $0x7]]
          %s723 = smul.f32 %s722, %s628
          %s724 = smul.f32 %s626, %s723
          %s725 = ssub.f32 %s721, %s724
          %s726 = smul.f32 %s722, %s629
          %s727 = smul.f32 %s627, %s726
          %s728 = ssub.f32 %s721, %s727
          %s729 = smax.f32 %s725, 0.0
          %s730 = smax.f32 %s728, 0.0
          %s731 = ssub.f32 %s729, %s730
          %s732 = smul.f32 %s731, %s731
          %s733 = sadd.f32 %s720, %s732
          %s734 = smul.f32 %s733, 512.0
          %s735 = ssub.f32 %s625, %s734
          %v736 = vrcp.pop 4096.0
          %s737 = vtos %v736
          %s738 = smul.f32 %s735, %s737
          %v739 = vld [vmem:[%s4] sm:$0x3]
          %v740 = vld [vmem:[%s5] sm:$0x3]
          %v741 = vadd.f32 %v740, 1.0
          %v742 = vmul.f32 %v739, %v739
          %v743 = vsub.f32 %v741, %v742
          %v744 = vmul.f32 %v740, 1.442695
          %v745 = vpow.pop %v744
          %v746 = vsub.f32 %v743, %v745
          %vm747 = vcmask 254976
          %v748 = vsel %vm747, %v746, 0.0
          %749 = vadd.xlane.f32.xlu0 %v748
          %v750 = vpop.xlane.xlu0 %749
          %v751 = vrot.slane %v750, 4
          %v752 = vadd.f32 %v750, %v751
          %v753 = vrot.slane %v752, 2
          %v754 = vadd.f32 %v752, %v753
          %v755 = vrot.slane %v754, 1
          %v756 = vadd.f32 %v754, %v755
          %s757 = vtos %v756
          %s758 = smul.f32 %s757, -0.5
          %s759 = smul.f32 %s738, 0.3
          %s760 = smul.f32 %s614, 0.5
          %s761 = sadd.f32 %s759, %s760
          %s762 = smul.f32 %s761, 50.0
          %s763 = sadd.f32 %s758, %s762
          %s764 = scalar_lea.smem [#allocation17], 0
          %765 = sst [smem:[%s764]] %s763
        $region72: #{tpu_custom_call.1} parent=35 // pred_fallthru
          _
        // Predicated region
        $region73: #{tpu_custom_call.1} parent=35 // pred_check
          %p766 = pneg %p147
        $region74: #{tpu_custom_call.1} parent=35 // pred_check_branch
          %768 = sbr.rel (%p766) target = $region76
        $region75: #{tpu_custom_call.1} parent=35 // pred_region
          %s770 = ssub.s32 16, 16
          %771 = vsyncadd [#allocation14], %s770
          %774 = dma.smem_to_hbm [#allocation17], 16, %s6, [#allocation14]
        $region76: #{tpu_custom_call.1} parent=35 // pred_fallthru
          _
        // Predicated region
        $region77: #{tpu_custom_call.1} parent=35 // pred_check
          %p775 = pneg %p147
        $region78: #{tpu_custom_call.1} parent=35 // pred_check_branch
          %777 = sbr.rel (%p775) target = $region80
        $region79: #{tpu_custom_call.1} parent=35 // pred_region
          %778 = dma.done [#allocation14], 16
        $region80: #{tpu_custom_call.1} parent=35 // pred_fallthru
          _
        %779 = sfence
      $region36: #{tpu_custom_call.1} parent=5 // pred_fallthru
        _
      %p780 = scmp.le.s32.totalorder 2, %s23
      // Predicated region
      $region81: #{tpu_custom_call.1} parent=5 // pred_check
        %p781 = pneg %p780
      $region82: #{tpu_custom_call.1} parent=5 // pred_check_branch
        %783 = sbr.rel (%p781) target = $region84
      $region83: #{tpu_custom_call.1} parent=5 // pred_region
        %s784 = ssub.s32 %s23, 2
      $region84: #{tpu_custom_call.1} parent=5 // pred_fallthru
        _
    $region6: #{tpu_custom_call.1} parent=1 // loop_footer
      %s27 = sadd.s32 1, %s23
    $region7: #{tpu_custom_call.1} parent=1 // loop_footer_branch
      %22 = sbr.rel target = $region3
    $region8: #{tpu_custom_call.1} parent=1 // loop_exit
      _
    %785 = vsyncpa [#allocation13], 1
    %s786 = scalar_lea.sflag [#allocation13], 1
    %787 = vsyncpa %s786, 1
    %788 = vsyncpa [#allocation16], 1
    %789 = vsyncpa [#allocation14], 1
    %s790 = scalar_lea.sflag [#allocation14], 1
    %791 = vsyncpa %s790, 1

</llo_original>
